<compile_context>
chip_gen: v7x
topology: tpu7x:2x2x1
jax: 0.10.0
libtpu: 0.0.40
codegen_flags: <defaults>
</compile_context>

<pallas_src>
import functools

import jax
import jax.numpy as jnp
from jax.experimental import pallas as pl
from jax.experimental.pallas import tpu as pltpu

_LANES = 128            # TPU lane width; policy head padded to this many cols
_SUBLANES = 8           # f32 sublane tile; batch padded to a multiple of this
_MATMUL_DTYPE = jnp.bfloat16


# ----------------------------------------------------------------------------
# Fused Actor kernel (one batch block per grid step)
# ----------------------------------------------------------------------------
def _make_actor_kernel(BB, OBH, OBW):
    """BB: samples per grid step; OBH x OBW: grid of 2x2-output conv1 blocks."""
    OH2, OW2 = OBH - 1, OBW - 1        # conv2 output spatial (3 x 3)

    def kernel(p_ref, w1_ref, b1_ref, w2_ref, b2_ref, w3_ref, b3_ref,
               wfc_ref, bfc_ref, wpol_ref, bpol_ref, logp_ref, probs_ref):
        f32 = jnp.float32
        mm = w2_ref.dtype                      # bf16 matmul operand dtype

        # conv1: one superblock matmul.
        #   rows: (obh, obw, n)   cols: (py, px, c1)  (c1 = 32 conv1 channels)
        h1 = jnp.dot(p_ref[...], w1_ref[...], preferred_element_type=f32)
        h1 = jnp.maximum(h1 + b1_ref[...], 0.0)            # (OBH*OBW*BB, 128)

        # conv2: one matmul per output row; the 4 block taps are concatenated
        # along K (each tap slice is exactly one 128-lane vreg column, so the
        # concat is cheap vreg placement).  Slicing stays in f32 (sublane
        # aligned); a single cast per assembled row feeds the MXU.
        pieces3 = []                           # conv3 LHS pieces, (BB, 64) each
        for oh2 in range(OH2):
            taps = []
            for by in range(2):
                for bx in range(2):
                    start = (oh2 + by) * (OBW * BB) + bx * BB
                    taps.append(h1[start:start + OW2 * BB])       # (OW2*BB,128)
            lhs2 = jnp.concatenate(taps, axis=-1).astype(mm)      # (OW2*BB,512)
            h2 = jnp.dot(lhs2, w2_ref[...], preferred_element_type=f32)
            h2 = jnp.maximum(h2 + b2_ref[...], 0.0)               # (OW2*BB, 64)
            for ow2 in range(OW2):
                pieces3.append(h2[ow2 * BB:(ow2 + 1) * BB])       # (BB, 64)

        # conv3 (3x3 -> 1x1): all 9 taps concatenated along K -> one matmul.
        lhs3 = jnp.concatenate(pieces3, axis=-1).astype(mm)       # (BB, 576)
        h3 = jnp.dot(lhs3, w3_ref[...], preferred_element_type=f32)
        h3 = jnp.maximum(h3 + b3_ref[...], 0.0)            # (BB, 64) == flatten

        h4 = jnp.dot(h3.astype(mm), wfc_ref[...], preferred_element_type=f32)
        h4 = jnp.maximum(h4 + bfc_ref[...], 0.0)                   # (BB, 512)

        # policy head padded to 128 lanes; pad columns carry a -1e30 bias so
        # they contribute exactly 0 probability.
        logits = jnp.dot(h4.astype(mm), wpol_ref[...],
                         preferred_element_type=f32) + bpol_ref[...]  # (BB,128)

        m = jnp.max(logits, axis=-1, keepdims=True)
        e = jnp.exp(logits - m)
        s = jnp.sum(e, axis=-1, keepdims=True)
        logp_ref[...] = (logits - m) - jnp.log(s)                  # log-softmax
        # Reuse the exponentials; approx reciprocal runs on the (free) EUP slot.
        probs_ref[...] = e * pl.reciprocal(s, approx=True)

    return kernel


# ----------------------------------------------------------------------------
# Forward wrapper
# ----------------------------------------------------------------------------
def actor_forward(packed, x_nchw, sample_key, *, num_actions):
    """Fused Pallas forward. Returns (actions, log_probs, probs) like torch."""
    B0, cin, H, W = x_nchw.shape

    # Geometry supported by the fused kernel: conv1 out 8x8 (-> 4x4 blocks of
    # 2x2), conv2 out 3x3, conv3 out 1x1 (i.e. 36x36 inputs).
    # TODO(synk): generalize the superblock decomposition to other H/W.
    oh1, ow1 = (H - 8) // 4 + 1, (W - 8) // 4 + 1
    assert (H - 8) % 4 == 0 and (W - 8) % 4 == 0 and oh1 == 8 and ow1 == 8, (
        "fused Pallas Actor kernel currently supports 36x36 inputs")
    obh, obw = oh1 // 2, ow1 // 2                         # 4 x 4 superblocks

    # Pad batch to a sublane multiple and tile it with a parallel grid axis.
    B = ((B0 + _SUBLANES - 1) // _SUBLANES) * _SUBLANES
    BB = 16 if B % 16 == 0 else _SUBLANES                 # samples / grid step
    nblk = B // BB
    K = 12 * 12 * cin
    rows = obh * obw * BB                                 # conv1 matmul M

    # Cast to bf16 BEFORE patch extraction: the 12x12/stride-8 windows
    # duplicate the input ~2.25x, so the patch buffer (and its HBM traffic)
    # is halved by doing the cast first.
    x = jnp.transpose(x_nchw, (0, 2, 3, 1)).astype(_MATMUL_DTYPE)       # NHWC
    if B != B0:
        x = jnp.pad(x, ((0, B - B0), (0, 0), (0, 0), (0, 0)))

    # 12x12 / stride-8 superblock windows (receptive field of one 2x2 block of
    # conv1 outputs).  Rows ordered (batch_block, obh, obw, n), features
    # (r, c, ci).
    t = jnp.stack([x[:, 8 * i:8 * i + 12] for i in range(obh)], axis=1)
    t = jnp.stack([t[:, :, :, 8 * j:8 * j + 12, :] for j in range(obw)], axis=2)
    t = t.reshape(nblk, BB, obh, obw, 12, 12, cin)
    t = jnp.transpose(t, (0, 2, 3, 1, 4, 5, 6))     # (nblk, obh, obw, BB, ...)
    patches = t.reshape(nblk, rows, K)

    def const_spec(a):                              # weights: VMEM-resident
        nd = a.ndim
        return pl.BlockSpec(a.shape, lambda b, _nd=nd: (0,) * _nd)

    weight_args = (packed["w1s"], packed["b1s"], packed["w2b"], packed["b2"],
                   packed["w3r"], packed["b3"], packed["wfc"], packed["bfc"],
                   packed["wpol"], packed["bpol"])

    in_specs = ([pl.BlockSpec((None, rows, K), lambda b: (b, 0, 0))]
                + [const_spec(a) for a in weight_args])

    logp_pad, probs_pad = pl.pallas_call(
        _make_actor_kernel(BB, obh, obw),
        out_shape=(jax.ShapeDtypeStruct((B, _LANES), jnp.float32),
                   jax.ShapeDtypeStruct((B, _LANES), jnp.float32)),
        grid=(nblk,),
        in_specs=in_specs,
        out_specs=(pl.BlockSpec((BB, _LANES), lambda b: (b, 0)),
                   pl.BlockSpec((BB, _LANES), lambda b: (b, 0))),
        # Batch axis is parallel: v7x's two TensorCores split the batch blocks;
        # constant weight index_maps keep the ~0.5 MB of weights resident.
        compiler_params=pltpu.CompilerParams(
            dimension_semantics=("parallel",)),
    )(patches, *weight_args)

    logp = logp_pad[:B0, :num_actions]            # log-softmax over real actions
    probs = probs_pad[:B0, :num_actions]

    # TODO(synk): th.multinomial consumes the torch RNG stream; here the same
    # categorical distribution is sampled with jax.random (different stream).
    actions = jax.random.categorical(sample_key, logp, axis=-1)
    log_probs = jnp.take_along_axis(logp, actions[:, None], axis=-1)[:, 0]
    return actions, log_probs, probs


# ----------------------------------------------------------------------------
# One-time weight packing (outside the hot path)
# ----------------------------------------------------------------------------
def pack_params(params, num_actions):
    w1 = params["w1"].astype(jnp.float32)        # (8, 8, Cin, 32) HWIO
    cin = w1.shape[2]
    # conv1 superblock weight: rows (r, c, ci) of the 12x12 window,
    # cols (py, px, co) = 2x2 conv1 output pixels x 32 channels.
    w1s = jnp.zeros((12, 12, cin, 2, 2, 32), jnp.float32)
    for py in range(2):
        for px in range(2):
            w1s = w1s.at[4 * py:4 * py + 8, 4 * px:4 * px + 8, :, py, px, :].set(w1)
    w1s = w1s.reshape(12 * 12 * cin, 2 * 2 * 32)
    b1s = jnp.tile(params["b1"].astype(jnp.float32), 4).reshape(1, 128)

    # conv2 weight regrouped by 2x2 block tap and flattened along K:
    # rows ordered (by, bx, py, px, ci) -> matches the in-kernel concat of the
    # 4 block-tap slices of h1 along the lane/K axis.
    w2 = params["w2"].astype(jnp.float32)        # (4, 4, 32, 64) = (ky, kx, ci, co)
    w2b = (w2.reshape(2, 2, 2, 2, 32, 64)        # (by, py, bx, px, ci, co)
             .transpose(0, 2, 1, 3, 4, 5)        # (by, bx, py, px, ci, co)
             .reshape(4 * 2 * 2 * 32, 64))       # (512, 64)
    b2 = params["b2"].astype(jnp.float32).reshape(1, 64)

    # conv3 weight flattened along K: rows (ky, kx, ci) -> matches the concat
    # of the 9 (BB, 64) conv2 tap slices along the lane/K axis.
    w3r = params["w3"].astype(jnp.float32).reshape(9 * 64, 64)   # (576, 64)
    b3 = params["b3"].astype(jnp.float32).reshape(1, 64)

    wfc = params["w_fc"].astype(jnp.float32)     # (n_flatten = 64, 512)
    assert wfc.shape[0] == 64, "fused kernel assumes conv3 output is 1x1"
    bfc = params["b_fc"].astype(jnp.float32).reshape(1, 512)

    # Policy head padded to 128 lanes; pads get zero weight and -1e30 bias.
    assert num_actions <= _LANES
    wpol = jnp.zeros((512, _LANES), jnp.float32).at[:, :num_actions].set(
        params["w_pol"].astype(jnp.float32))
    bpol = jnp.full((1, _LANES), -1e30, jnp.float32).at[0, :num_actions].set(
        params["b_pol"].astype(jnp.float32))

    bf16 = _MATMUL_DTYPE
    return dict(w1s=w1s.astype(bf16), b1s=b1s,
                w2b=w2b.astype(bf16), b2=b2,
                w3r=w3r.astype(bf16), b3=b3,
                wfc=wfc.astype(bf16), bfc=bfc,
                wpol=wpol.astype(bf16), bpol=bpol)


# ----------------------------------------------------------------------------
# Deterministic parameter init (PyTorch-default-style uniform(+-1/sqrt(fan_in)))
# ----------------------------------------------------------------------------
def init_params(key, in_channels, height, width, num_actions):
    def uniform(k, shape, fan_in):
        bound = 1.0 / jnp.sqrt(jnp.asarray(fan_in, jnp.float32))
        return jax.random.uniform(k, shape, jnp.float32, -bound, bound)

    ks = jax.random.split(key, 10)

    w1 = uniform(ks[0], (8, 8, in_channels, 32), in_channels * 8 * 8)
    b1 = uniform(ks[1], (32,), in_channels * 8 * 8)
    w2 = uniform(ks[2], (4, 4, 32, 64), 32 * 4 * 4)
    b2 = uniform(ks[3], (64,), 32 * 4 * 4)
    w3 = uniform(ks[4], (3, 3, 64, 64), 64 * 3 * 3)
    b3 = uniform(ks[5], (64,), 64 * 3 * 3)

    h1 = (height - 8) // 4 + 1
    w1s = (width - 8) // 4 + 1
    h2 = (h1 - 4) // 2 + 1
    w2s = (w1s - 4) // 2 + 1
    h3 = (h2 - 3) // 1 + 1
    w3s = (w2s - 3) // 1 + 1
    n_flatten = 64 * h3 * w3s

    w_fc = uniform(ks[6], (n_flatten, 512), n_flatten)
    b_fc = uniform(ks[7], (512,), n_flatten)
    w_pol = uniform(ks[8], (512, num_actions), 512)
    b_pol = uniform(ks[9], (num_actions,), 512)

    return dict(w1=w1, b1=b1, w2=w2, b2=b2, w3=w3, b3=b3,
                w_fc=w_fc, b_fc=b_fc, w_pol=w_pol, b_pol=b_pol)


# ----------------------------------------------------------------------------
# Pure-JAX f32 reference (for a loose numerical cross-check)
# ----------------------------------------------------------------------------
def reference_probs(params, x_nchw):
    x = jnp.transpose(x_nchw, (0, 2, 3, 1)).astype(jnp.float32)   # NHWC

    def conv(h, w, b, stride):
        y = jax.lax.conv_general_dilated(
            h, w, (stride, stride), "VALID",
            dimension_numbers=("NHWC", "HWIO", "NHWC"))
        return jax.nn.relu(y + b)

    h = conv(x, params["w1"], params["b1"], 4)
    h = conv(h, params["w2"], params["b2"], 2)
    h = conv(h, params["w3"], params["b3"], 1)
    h = h.reshape(h.shape[0], -1)                 # conv3 out is 1x1 -> channels
    h = jax.nn.relu(h @ params["w_fc"] + params["b_fc"])
    logits = h @ params["w_pol"] + params["b_pol"]
    return jax.nn.softmax(logits, axis=-1)


if __name__ == "__main__":
    # batch=2, in_channels=4, 36x36 spatial (36 -> 8 -> 3 -> 1), num_actions=6.
    batch, in_channels, height, width, num_actions = 2, 4, 36, 36, 6

    key = jax.random.PRNGKey(0)
    k_params, k_input, k_sample = jax.random.split(key, 3)

    params = init_params(k_params, in_channels, height, width, num_actions)
    packed = pack_params(params, num_actions)
    x = jax.random.normal(k_input, (batch, in_channels, height, width), jnp.float32)

    fwd = jax.jit(functools.partial(actor_forward, num_actions=num_actions))
    actions, log_probs, probs = fwd(packed, x, k_sample)
    jax.block_until_ready((actions, log_probs, probs))

    assert actions.shape == (batch,)
    assert log_probs.shape == (batch,)
    assert probs.shape == (batch, num_actions)
    assert bool(jnp.all(jnp.isfinite(probs)))
    assert bool(jnp.all(jnp.isfinite(log_probs)))
    assert bool(jnp.all((actions >= 0) & (actions < num_actions)))
    # approx EUP reciprocal in the softmax tail -> allow ~1e-3 slack on the sum
    assert bool(jnp.allclose(jnp.sum(probs, axis=-1), 1.0, atol=2e-3))

    # Loose cross-check against the f32 reference (bf16 matmuls, f32 accumulate).
    ref = reference_probs(params, x)
    assert bool(jnp.allclose(probs, ref, atol=5e-2)), "probs mismatch vs f32 ref"

    print("KERNEL_OK")
</pallas_src>

<mosaic_0001>
module attributes {stable_mosaic.version = 11 : i64} {
  func.func @kernel(%arg0: i32, %arg1: memref<1x128x576xbf16, #tpu.memory_space<vmem>>, %arg2: memref<576x128xbf16, #tpu.memory_space<vmem>>, %arg3: memref<1x128xf32, #tpu.memory_space<vmem>>, %arg4: memref<512x64xbf16, #tpu.memory_space<vmem>>, %arg5: memref<1x64xf32, #tpu.memory_space<vmem>>, %arg6: memref<576x64xbf16, #tpu.memory_space<vmem>>, %arg7: memref<1x64xf32, #tpu.memory_space<vmem>>, %arg8: memref<64x512xbf16, #tpu.memory_space<vmem>>, %arg9: memref<1x512xf32, #tpu.memory_space<vmem>>, %arg10: memref<512x128xbf16, #tpu.memory_space<vmem>>, %arg11: memref<1x128xf32, #tpu.memory_space<vmem>>, %arg12: memref<8x128xf32, #tpu.memory_space<vmem>>, %arg13: memref<8x128xf32, #tpu.memory_space<vmem>>) attributes {dimension_semantics = [#tpu.dimension_semantics<parallel>], iteration_bounds = array<i64: 1>, scalar_prefetch = 0 : i64, scratch_operands = 0 : i64, tpu.core_type = #tpu.core_type<tc>, window_params = [{transform_indices = @transform_0, window_bounds = array<i64: 1, 128, 576>}, {pipeline_mode = #tpu.pipeline_mode<synchronous>, transform_indices = @transform_1, window_bounds = array<i64: 576, 128>}, {pipeline_mode = #tpu.pipeline_mode<synchronous>, transform_indices = @transform_2, window_bounds = array<i64: 1, 128>}, {pipeline_mode = #tpu.pipeline_mode<synchronous>, transform_indices = @transform_3, window_bounds = array<i64: 512, 64>}, {pipeline_mode = #tpu.pipeline_mode<synchronous>, transform_indices = @transform_4, window_bounds = array<i64: 1, 64>}, {pipeline_mode = #tpu.pipeline_mode<synchronous>, transform_indices = @transform_5, window_bounds = array<i64: 576, 64>}, {pipeline_mode = #tpu.pipeline_mode<synchronous>, transform_indices = @transform_6, window_bounds = array<i64: 1, 64>}, {pipeline_mode = #tpu.pipeline_mode<synchronous>, transform_indices = @transform_7, window_bounds = array<i64: 64, 512>}, {pipeline_mode = #tpu.pipeline_mode<synchronous>, transform_indices = @transform_8, window_bounds = array<i64: 1, 512>}, {pipeline_mode = #tpu.pipeline_mode<synchronous>, transform_indices = @transform_9, window_bounds = array<i64: 512, 128>}, {pipeline_mode = #tpu.pipeline_mode<synchronous>, transform_indices = @transform_10, window_bounds = array<i64: 1, 128>}, {transform_indices = @transform_11, window_bounds = array<i64: 8, 128>}, {transform_indices = @transform_12, window_bounds = array<i64: 8, 128>}]} {
    %c0 = arith.constant 0 : index
    %c0_0 = arith.constant 0 : index
    %c0_1 = arith.constant 0 : index
    %0 = vector.load %arg1[%c0, %c0_0, %c0_1] : memref<1x128x576xbf16, #tpu.memory_space<vmem>>, vector<1x128x576xbf16>
    %1 = vector.shape_cast %0 : vector<1x128x576xbf16> to vector<128x576xbf16>
    %c0_2 = arith.constant 0 : index
    %c0_3 = arith.constant 0 : index
    %2 = vector.load %arg2[%c0_2, %c0_3] : memref<576x128xbf16, #tpu.memory_space<vmem>>, vector<576x128xbf16>
    %cst = arith.constant dense<0.000000e+00> : vector<128x128xf32>
    %3 = tpu.matmul %1, %2, %cst {dimension_numbers = #tpu.dot_dimension_numbers<[1], [0], [0], [1], [0, 0, 1, 1], [], []>} : vector<128x576xbf16>, vector<576x128xbf16>, vector<128x128xf32> -> vector<128x128xf32>
    %c0_4 = arith.constant 0 : index
    %c0_5 = arith.constant 0 : index
    %4 = vector.load %arg3[%c0_4, %c0_5] : memref<1x128xf32, #tpu.memory_space<vmem>>, vector<1x128xf32>
    %5 = vector.broadcast %4 : vector<1x128xf32> to vector<128x128xf32>
    %6 = arith.addf %3, %5 : vector<128x128xf32>
    %cst_6 = arith.constant 0.000000e+00 : f32
    %7 = vector.broadcast %cst_6 : f32 to vector<128x128xf32>
    %8 = arith.maximumf %6, %7 : vector<128x128xf32>
    %9 = vector.extract_strided_slice %8 {offsets = [0, 0], sizes = [24, 128], strides = [1, 1]} : vector<128x128xf32> to vector<24x128xf32>
    %10 = vector.extract_strided_slice %8 {offsets = [8, 0], sizes = [24, 128], strides = [1, 1]} : vector<128x128xf32> to vector<24x128xf32>
    %11 = vector.extract_strided_slice %8 {offsets = [32, 0], sizes = [24, 128], strides = [1, 1]} : vector<128x128xf32> to vector<24x128xf32>
    %12 = vector.extract_strided_slice %8 {offsets = [40, 0], sizes = [24, 128], strides = [1, 1]} : vector<128x128xf32> to vector<24x128xf32>
    %13 = tpu.concatenate %9, %10, %11, %12 in 1 : vector<24x128xf32>, vector<24x128xf32>, vector<24x128xf32>, vector<24x128xf32> -> vector<24x512xf32>
    %14 = arith.truncf %13 : vector<24x512xf32> to vector<24x512xbf16>
    %c0_7 = arith.constant 0 : index
    %c0_8 = arith.constant 0 : index
    %15 = vector.load %arg4[%c0_7, %c0_8] : memref<512x64xbf16, #tpu.memory_space<vmem>>, vector<512x64xbf16>
    %cst_9 = arith.constant dense<0.000000e+00> : vector<24x64xf32>
    %16 = tpu.matmul %14, %15, %cst_9 {dimension_numbers = #tpu.dot_dimension_numbers<[1], [0], [0], [1], [0, 0, 1, 1], [], []>} : vector<24x512xbf16>, vector<512x64xbf16>, vector<24x64xf32> -> vector<24x64xf32>
    %c0_10 = arith.constant 0 : index
    %c0_11 = arith.constant 0 : index
    %17 = vector.load %arg5[%c0_10, %c0_11] : memref<1x64xf32, #tpu.memory_space<vmem>>, vector<1x64xf32>
    %18 = vector.broadcast %17 : vector<1x64xf32> to vector<24x64xf32>
    %19 = arith.addf %16, %18 : vector<24x64xf32>
    %cst_12 = arith.constant 0.000000e+00 : f32
    %20 = vector.broadcast %cst_12 : f32 to vector<24x64xf32>
    %21 = arith.maximumf %19, %20 : vector<24x64xf32>
    %22 = vector.extract_strided_slice %21 {offsets = [0, 0], sizes = [8, 64], strides = [1, 1]} : vector<24x64xf32> to vector<8x64xf32>
    %23 = vector.extract_strided_slice %21 {offsets = [8, 0], sizes = [8, 64], strides = [1, 1]} : vector<24x64xf32> to vector<8x64xf32>
    %24 = vector.extract_strided_slice %21 {offsets = [16, 0], sizes = [8, 64], strides = [1, 1]} : vector<24x64xf32> to vector<8x64xf32>
    %25 = vector.extract_strided_slice %8 {offsets = [32, 0], sizes = [24, 128], strides = [1, 1]} : vector<128x128xf32> to vector<24x128xf32>
    %26 = vector.extract_strided_slice %8 {offsets = [40, 0], sizes = [24, 128], strides = [1, 1]} : vector<128x128xf32> to vector<24x128xf32>
    %27 = vector.extract_strided_slice %8 {offsets = [64, 0], sizes = [24, 128], strides = [1, 1]} : vector<128x128xf32> to vector<24x128xf32>
    %28 = vector.extract_strided_slice %8 {offsets = [72, 0], sizes = [24, 128], strides = [1, 1]} : vector<128x128xf32> to vector<24x128xf32>
    %29 = tpu.concatenate %25, %26, %27, %28 in 1 : vector<24x128xf32>, vector<24x128xf32>, vector<24x128xf32>, vector<24x128xf32> -> vector<24x512xf32>
    %30 = arith.truncf %29 : vector<24x512xf32> to vector<24x512xbf16>
    %c0_13 = arith.constant 0 : index
    %c0_14 = arith.constant 0 : index
    %31 = vector.load %arg4[%c0_13, %c0_14] : memref<512x64xbf16, #tpu.memory_space<vmem>>, vector<512x64xbf16>
    %cst_15 = arith.constant dense<0.000000e+00> : vector<24x64xf32>
    %32 = tpu.matmul %30, %31, %cst_15 {dimension_numbers = #tpu.dot_dimension_numbers<[1], [0], [0], [1], [0, 0, 1, 1], [], []>} : vector<24x512xbf16>, vector<512x64xbf16>, vector<24x64xf32> -> vector<24x64xf32>
    %c0_16 = arith.constant 0 : index
    %c0_17 = arith.constant 0 : index
    %33 = vector.load %arg5[%c0_16, %c0_17] : memref<1x64xf32, #tpu.memory_space<vmem>>, vector<1x64xf32>
    %34 = vector.broadcast %33 : vector<1x64xf32> to vector<24x64xf32>
    %35 = arith.addf %32, %34 : vector<24x64xf32>
    %cst_18 = arith.constant 0.000000e+00 : f32
    %36 = vector.broadcast %cst_18 : f32 to vector<24x64xf32>
    %37 = arith.maximumf %35, %36 : vector<24x64xf32>
    %38 = vector.extract_strided_slice %37 {offsets = [0, 0], sizes = [8, 64], strides = [1, 1]} : vector<24x64xf32> to vector<8x64xf32>
    %39 = vector.extract_strided_slice %37 {offsets = [8, 0], sizes = [8, 64], strides = [1, 1]} : vector<24x64xf32> to vector<8x64xf32>
    %40 = vector.extract_strided_slice %37 {offsets = [16, 0], sizes = [8, 64], strides = [1, 1]} : vector<24x64xf32> to vector<8x64xf32>
    %41 = vector.extract_strided_slice %8 {offsets = [64, 0], sizes = [24, 128], strides = [1, 1]} : vector<128x128xf32> to vector<24x128xf32>
    %42 = vector.extract_strided_slice %8 {offsets = [72, 0], sizes = [24, 128], strides = [1, 1]} : vector<128x128xf32> to vector<24x128xf32>
    %43 = vector.extract_strided_slice %8 {offsets = [96, 0], sizes = [24, 128], strides = [1, 1]} : vector<128x128xf32> to vector<24x128xf32>
    %44 = vector.extract_strided_slice %8 {offsets = [104, 0], sizes = [24, 128], strides = [1, 1]} : vector<128x128xf32> to vector<24x128xf32>
    %45 = tpu.concatenate %41, %42, %43, %44 in 1 : vector<24x128xf32>, vector<24x128xf32>, vector<24x128xf32>, vector<24x128xf32> -> vector<24x512xf32>
    %46 = arith.truncf %45 : vector<24x512xf32> to vector<24x512xbf16>
    %c0_19 = arith.constant 0 : index
    %c0_20 = arith.constant 0 : index
    %47 = vector.load %arg4[%c0_19, %c0_20] : memref<512x64xbf16, #tpu.memory_space<vmem>>, vector<512x64xbf16>
    %cst_21 = arith.constant dense<0.000000e+00> : vector<24x64xf32>
    %48 = tpu.matmul %46, %47, %cst_21 {dimension_numbers = #tpu.dot_dimension_numbers<[1], [0], [0], [1], [0, 0, 1, 1], [], []>} : vector<24x512xbf16>, vector<512x64xbf16>, vector<24x64xf32> -> vector<24x64xf32>
    %c0_22 = arith.constant 0 : index
    %c0_23 = arith.constant 0 : index
    %49 = vector.load %arg5[%c0_22, %c0_23] : memref<1x64xf32, #tpu.memory_space<vmem>>, vector<1x64xf32>
    %50 = vector.broadcast %49 : vector<1x64xf32> to vector<24x64xf32>
    %51 = arith.addf %48, %50 : vector<24x64xf32>
    %cst_24 = arith.constant 0.000000e+00 : f32
    %52 = vector.broadcast %cst_24 : f32 to vector<24x64xf32>
    %53 = arith.maximumf %51, %52 : vector<24x64xf32>
    %54 = vector.extract_strided_slice %53 {offsets = [0, 0], sizes = [8, 64], strides = [1, 1]} : vector<24x64xf32> to vector<8x64xf32>
    %55 = vector.extract_strided_slice %53 {offsets = [8, 0], sizes = [8, 64], strides = [1, 1]} : vector<24x64xf32> to vector<8x64xf32>
    %56 = vector.extract_strided_slice %53 {offsets = [16, 0], sizes = [8, 64], strides = [1, 1]} : vector<24x64xf32> to vector<8x64xf32>
    %57 = tpu.concatenate %22, %23, %24, %38, %39, %40, %54, %55, %56 in 1 : vector<8x64xf32>, vector<8x64xf32>, vector<8x64xf32>, vector<8x64xf32>, vector<8x64xf32>, vector<8x64xf32>, vector<8x64xf32>, vector<8x64xf32>, vector<8x64xf32> -> vector<8x576xf32>
    %58 = arith.truncf %57 : vector<8x576xf32> to vector<8x576xbf16>
    %c0_25 = arith.constant 0 : index
    %c0_26 = arith.constant 0 : index
    %59 = vector.load %arg6[%c0_25, %c0_26] : memref<576x64xbf16, #tpu.memory_space<vmem>>, vector<576x64xbf16>
    %cst_27 = arith.constant dense<0.000000e+00> : vector<8x64xf32>
    %60 = tpu.matmul %58, %59, %cst_27 {dimension_numbers = #tpu.dot_dimension_numbers<[1], [0], [0], [1], [0, 0, 1, 1], [], []>} : vector<8x576xbf16>, vector<576x64xbf16>, vector<8x64xf32> -> vector<8x64xf32>
    %c0_28 = arith.constant 0 : index
    %c0_29 = arith.constant 0 : index
    %61 = vector.load %arg7[%c0_28, %c0_29] : memref<1x64xf32, #tpu.memory_space<vmem>>, vector<1x64xf32>
    %62 = vector.broadcast %61 : vector<1x64xf32> to vector<8x64xf32>
    %63 = arith.addf %60, %62 : vector<8x64xf32>
    %cst_30 = arith.constant 0.000000e+00 : f32
    %64 = vector.broadcast %cst_30 : f32 to vector<8x64xf32>
    %65 = arith.maximumf %63, %64 : vector<8x64xf32>
    %66 = arith.truncf %65 : vector<8x64xf32> to vector<8x64xbf16>
    %c0_31 = arith.constant 0 : index
    %c0_32 = arith.constant 0 : index
    %67 = vector.load %arg8[%c0_31, %c0_32] : memref<64x512xbf16, #tpu.memory_space<vmem>>, vector<64x512xbf16>
    %cst_33 = arith.constant dense<0.000000e+00> : vector<8x512xf32>
    %68 = tpu.matmul %66, %67, %cst_33 {dimension_numbers = #tpu.dot_dimension_numbers<[1], [0], [0], [1], [0, 0, 1, 1], [], []>} : vector<8x64xbf16>, vector<64x512xbf16>, vector<8x512xf32> -> vector<8x512xf32>
    %c0_34 = arith.constant 0 : index
    %c0_35 = arith.constant 0 : index
    %69 = vector.load %arg9[%c0_34, %c0_35] : memref<1x512xf32, #tpu.memory_space<vmem>>, vector<1x512xf32>
    %70 = vector.broadcast %69 : vector<1x512xf32> to vector<8x512xf32>
    %71 = arith.addf %68, %70 : vector<8x512xf32>
    %cst_36 = arith.constant 0.000000e+00 : f32
    %72 = vector.broadcast %cst_36 : f32 to vector<8x512xf32>
    %73 = arith.maximumf %71, %72 : vector<8x512xf32>
    %74 = arith.truncf %73 : vector<8x512xf32> to vector<8x512xbf16>
    %c0_37 = arith.constant 0 : index
    %c0_38 = arith.constant 0 : index
    %75 = vector.load %arg10[%c0_37, %c0_38] : memref<512x128xbf16, #tpu.memory_space<vmem>>, vector<512x128xbf16>
    %cst_39 = arith.constant dense<0.000000e+00> : vector<8x128xf32>
    %76 = tpu.matmul %74, %75, %cst_39 {dimension_numbers = #tpu.dot_dimension_numbers<[1], [0], [0], [1], [0, 0, 1, 1], [], []>} : vector<8x512xbf16>, vector<512x128xbf16>, vector<8x128xf32> -> vector<8x128xf32>
    %c0_40 = arith.constant 0 : index
    %c0_41 = arith.constant 0 : index
    %77 = vector.load %arg11[%c0_40, %c0_41] : memref<1x128xf32, #tpu.memory_space<vmem>>, vector<1x128xf32>
    %78 = vector.broadcast %77 : vector<1x128xf32> to vector<8x128xf32>
    %79 = arith.addf %76, %78 : vector<8x128xf32>
    %cst_42 = arith.constant dense<0xFF800000> : vector<8xf32>
    %80 = vector.multi_reduction <maximumf>, %79, %cst_42 [1] : vector<8x128xf32> to vector<8xf32>
    %81 = vector.shape_cast %80 : vector<8xf32> to vector<8x1xf32>
    %82 = vector.broadcast %81 : vector<8x1xf32> to vector<8x128xf32>
    %83 = arith.subf %79, %82 : vector<8x128xf32>
    %84 = math.exp %83 : vector<8x128xf32>
    %cst_43 = arith.constant dense<0.000000e+00> : vector<8xf32>
    %85 = vector.multi_reduction <add>, %84, %cst_43 [1] : vector<8x128xf32> to vector<8xf32>
    %86 = vector.shape_cast %85 : vector<8xf32> to vector<8x1xf32>
    %87 = vector.broadcast %81 : vector<8x1xf32> to vector<8x128xf32>
    %88 = arith.subf %79, %87 : vector<8x128xf32>
    %89 = math.log %86 : vector<8x1xf32>
    %90 = vector.broadcast %89 : vector<8x1xf32> to vector<8x128xf32>
    %91 = arith.subf %88, %90 : vector<8x128xf32>
    %c0_44 = arith.constant 0 : index
    %c0_45 = arith.constant 0 : index
    %92 = vector.load %arg12[%c0_44, %c0_45] : memref<8x128xf32, #tpu.memory_space<vmem>>, vector<8x128xf32>
    tpu.vector_store %arg12[%c0_44, %c0_45], %91 {strides = array<i32>} : memref<8x128xf32, #tpu.memory_space<vmem>>, vector<8x128xf32>,
    %93 = tpu.reciprocal %86 {approx = true} : vector<8x1xf32> -> vector<8x1xf32>
    %94 = vector.broadcast %93 : vector<8x1xf32> to vector<8x128xf32>
    %95 = arith.mulf %84, %94 : vector<8x128xf32>
    %c0_46 = arith.constant 0 : index
    %c0_47 = arith.constant 0 : index
    %96 = vector.load %arg13[%c0_46, %c0_47] : memref<8x128xf32, #tpu.memory_space<vmem>>, vector<8x128xf32>
    tpu.vector_store %arg13[%c0_46, %c0_47], %95 {strides = array<i32>} : memref<8x128xf32, #tpu.memory_space<vmem>>, vector<8x128xf32>,
    return
  }
  func.func @transform_0(%arg0: i32) -> (i32, i32, i32) {
    %c0_i32 = arith.constant 0 : i32
    %c0_i32_0 = arith.constant 0 : i32
    %c0_i32_1 = arith.constant 0 : i32
    return %arg0, %c0_i32, %c0_i32_0 : i32, i32, i32
  }
  func.func @transform_1(%arg0: i32) -> (i32, i32) {
    %c0_i32 = arith.constant 0 : i32
    %c0_i32_0 = arith.constant 0 : i32
    %c0_i32_1 = arith.constant 0 : i32
    return %c0_i32, %c0_i32_0 : i32, i32
  }
  func.func @transform_2(%arg0: i32) -> (i32, i32) {
    %c0_i32 = arith.constant 0 : i32
    %c0_i32_0 = arith.constant 0 : i32
    %c0_i32_1 = arith.constant 0 : i32
    return %c0_i32, %c0_i32_0 : i32, i32
  }
  func.func @transform_3(%arg0: i32) -> (i32, i32) {
    %c0_i32 = arith.constant 0 : i32
    %c0_i32_0 = arith.constant 0 : i32
    %c0_i32_1 = arith.constant 0 : i32
    return %c0_i32, %c0_i32_0 : i32, i32
  }
  func.func @transform_4(%arg0: i32) -> (i32, i32) {
    %c0_i32 = arith.constant 0 : i32
    %c0_i32_0 = arith.constant 0 : i32
    %c0_i32_1 = arith.constant 0 : i32
    return %c0_i32, %c0_i32_0 : i32, i32
  }
  func.func @transform_5(%arg0: i32) -> (i32, i32) {
    %c0_i32 = arith.constant 0 : i32
    %c0_i32_0 = arith.constant 0 : i32
    %c0_i32_1 = arith.constant 0 : i32
    return %c0_i32, %c0_i32_0 : i32, i32
  }
  func.func @transform_6(%arg0: i32) -> (i32, i32) {
    %c0_i32 = arith.constant 0 : i32
    %c0_i32_0 = arith.constant 0 : i32
    %c0_i32_1 = arith.constant 0 : i32
    return %c0_i32, %c0_i32_0 : i32, i32
  }
  func.func @transform_7(%arg0: i32) -> (i32, i32) {
    %c0_i32 = arith.constant 0 : i32
    %c0_i32_0 = arith.constant 0 : i32
    %c0_i32_1 = arith.constant 0 : i32
    return %c0_i32, %c0_i32_0 : i32, i32
  }
  func.func @transform_8(%arg0: i32) -> (i32, i32) {
    %c0_i32 = arith.constant 0 : i32
    %c0_i32_0 = arith.constant 0 : i32
    %c0_i32_1 = arith.constant 0 : i32
    return %c0_i32, %c0_i32_0 : i32, i32
  }
  func.func @transform_9(%arg0: i32) -> (i32, i32) {
    %c0_i32 = arith.constant 0 : i32
    %c0_i32_0 = arith.constant 0 : i32
    %c0_i32_1 = arith.constant 0 : i32
    return %c0_i32, %c0_i32_0 : i32, i32
  }
  func.func @transform_10(%arg0: i32) -> (i32, i32) {
    %c0_i32 = arith.constant 0 : i32
    %c0_i32_0 = arith.constant 0 : i32
    %c0_i32_1 = arith.constant 0 : i32
    return %c0_i32, %c0_i32_0 : i32, i32
  }
  func.func @transform_11(%arg0: i32) -> (i32, i32) {
    %c0_i32 = arith.constant 0 : i32
    %c0_i32_0 = arith.constant 0 : i32
    return %arg0, %c0_i32 : i32, i32
  }
  func.func @transform_12(%arg0: i32) -> (i32, i32) {
    %c0_i32 = arith.constant 0 : i32
    %c0_i32_0 = arith.constant 0 : i32
    return %arg0, %c0_i32 : i32, i32
  }
}

</mosaic_0001>

<llo_original>
// kernel: actor_forward.1
$region0: #{actor_forward.1}
  #allocation0 [shape = 'u32[]', space=smem, size = 0x4, offset = 0x4, fixed_abs, tag = 'smem constant byte address 0x4 - core index']
  #allocation1 [shape = 'u32[144,128]{1,0:T(1,128)}', space=vmem, size = 0x12000, scoped, tag = 'internal scratch']
  %s0 = inlined_call_operand.vmem [shape: bf16[1,128,576], index: 0, kind: input, shape index: {}]
  %s1 = inlined_call_operand.vmem [shape: bf16[576,128], index: 1, kind: input, shape index: {}]
  %s2 = inlined_call_operand.vmem [shape: f32[1,128], index: 2, kind: input, shape index: {}]
  %s3 = inlined_call_operand.vmem [shape: bf16[512,64], index: 3, kind: input, shape index: {}]
  %s4 = inlined_call_operand.vmem [shape: f32[1,64], index: 4, kind: input, shape index: {}]
  %s5 = inlined_call_operand.vmem [shape: bf16[576,64], index: 5, kind: input, shape index: {}]
  %s6 = inlined_call_operand.vmem [shape: f32[1,64], index: 6, kind: input, shape index: {}]
  %s7 = inlined_call_operand.vmem [shape: bf16[64,512], index: 7, kind: input, shape index: {}]
  %s8 = inlined_call_operand.vmem [shape: f32[1,512], index: 8, kind: input, shape index: {}]
  %s9 = inlined_call_operand.vmem [shape: bf16[512,128], index: 9, kind: input, shape index: {}]
  %s10 = inlined_call_operand.vmem [shape: f32[1,128], index: 10, kind: input, shape index: {}]
  %s11 = inlined_call_operand.vmem [shape: f32[8,128], index: 11, kind: output, shape index: {0}]
  %s12 = inlined_call_operand.vmem [shape: f32[8,128], index: 12, kind: output, shape index: {1}]
  %13 = xla_tuple %s11, %s12
  %s14 = sld [smem:[#allocation0]]
  $region62: #{actor_forward.1} parent=0
    _
  %s16 = ssub.s32 1, %s14
  %s17 = scalar_select 0, %s16, %s14
  // Predicated region
  $region2: #{actor_forward.1} parent=0 // pred_check
    _
  $region3: #{actor_forward.1} parent=0 // pred_check_branch
    %19 = sbr.rel (0) target = $region5
  $region4: #{actor_forward.1} parent=0 // pred_region
    _
  $region5: #{actor_forward.1} parent=0 // pred_fallthru
    _
  // Predicated region
  $region6: #{actor_forward.1} parent=0 // pred_check
    _
  $region7: #{actor_forward.1} parent=0 // pred_check_branch
    %21 = sbr.rel (0) target = $region9
  $region8: #{actor_forward.1} parent=0 // pred_region
    _
  $region9: #{actor_forward.1} parent=0 // pred_fallthru
    _
  // Predicated region
  $region10: #{actor_forward.1} parent=0 // pred_check
    _
  $region11: #{actor_forward.1} parent=0 // pred_check_branch
    %23 = sbr.rel (0) target = $region13
  $region12: #{actor_forward.1} parent=0 // pred_region
    _
  $region13: #{actor_forward.1} parent=0 // pred_fallthru
    _
  // Predicated region
  $region14: #{actor_forward.1} parent=0 // pred_check
    _
  $region15: #{actor_forward.1} parent=0 // pred_check_branch
    %25 = sbr.rel (0) target = $region17
  $region16: #{actor_forward.1} parent=0 // pred_region
    _
  $region17: #{actor_forward.1} parent=0 // pred_fallthru
    _
  // Predicated region
  $region18: #{actor_forward.1} parent=0 // pred_check
    _
  $region19: #{actor_forward.1} parent=0 // pred_check_branch
    %27 = sbr.rel (0) target = $region21
  $region20: #{actor_forward.1} parent=0 // pred_region
    _
  $region21: #{actor_forward.1} parent=0 // pred_fallthru
    _
  // Predicated region
  $region22: #{actor_forward.1} parent=0 // pred_check
    _
  $region23: #{actor_forward.1} parent=0 // pred_check_branch
    %29 = sbr.rel (0) target = $region25
  $region24: #{actor_forward.1} parent=0 // pred_region
    _
  $region25: #{actor_forward.1} parent=0 // pred_fallthru
    _
  // Predicated region
  $region26: #{actor_forward.1} parent=0 // pred_check
    _
  $region27: #{actor_forward.1} parent=0 // pred_check_branch
    %31 = sbr.rel (0) target = $region29
  $region28: #{actor_forward.1} parent=0 // pred_region
    _
  $region29: #{actor_forward.1} parent=0 // pred_fallthru
    _
  // Predicated region
  $region30: #{actor_forward.1} parent=0 // pred_check
    _
  $region31: #{actor_forward.1} parent=0 // pred_check_branch
    %33 = sbr.rel (0) target = $region33
  $region32: #{actor_forward.1} parent=0 // pred_region
    _
  $region33: #{actor_forward.1} parent=0 // pred_fallthru
    _
  // Predicated region
  $region34: #{actor_forward.1} parent=0 // pred_check
    _
  $region35: #{actor_forward.1} parent=0 // pred_check_branch
    %35 = sbr.rel (0) target = $region37
  $region36: #{actor_forward.1} parent=0 // pred_region
    _
  $region37: #{actor_forward.1} parent=0 // pred_fallthru
    _
  // Predicated region
  $region38: #{actor_forward.1} parent=0 // pred_check
    _
  $region39: #{actor_forward.1} parent=0 // pred_check_branch
    %37 = sbr.rel (0) target = $region41
  $region40: #{actor_forward.1} parent=0 // pred_region
    _
  $region41: #{actor_forward.1} parent=0 // pred_fallthru
    _
  // Predicated region
  $region42: #{actor_forward.1} parent=0 // pred_check
    _
  $region43: #{actor_forward.1} parent=0 // pred_check_branch
    %39 = sbr.rel (0) target = $region45
  $region44: #{actor_forward.1} parent=0 // pred_region
    _
  $region45: #{actor_forward.1} parent=0 // pred_fallthru
    _
  %v41 = vld [vmem:[%s0] sm:$0xff]
  %v42 = vld [vmem:[%s0 + $0x8] sm:$0xff]
  %v43 = vld [vmem:[%s0 + $0x10] sm:$0xf]
  %v44 = vld [vmem:[%s0 + $0x14] sm:$0xff]
  %v45 = vld [vmem:[%s0 + $0x1c] sm:$0xff]
  %v46 = vld [vmem:[%s0 + $0x24] sm:$0xf]
  %v47 = vld [vmem:[%s0 + $0x28] sm:$0xff]
  %v48 = vld [vmem:[%s0 + $0x30] sm:$0xff]
  %v49 = vld [vmem:[%s0 + $0x38] sm:$0xf]
  %v50 = vld [vmem:[%s0 + $0x3c] sm:$0xff]
  %v51 = vld [vmem:[%s0 + $0x44] sm:$0xff]
  %v52 = vld [vmem:[%s0 + $0x4c] sm:$0xf]
  %v53 = vld [vmem:[%s0 + $0x50] sm:$0xff]
  %v54 = vld [vmem:[%s0 + $0x58] sm:$0xff]
  %v55 = vld [vmem:[%s0 + $0x60] sm:$0xf]
  %v56 = vld [vmem:[%s0 + $0x64] sm:$0xff]
  %v57 = vld [vmem:[%s0 + $0x6c] sm:$0xff]
  %v58 = vld [vmem:[%s0 + $0x74] sm:$0xf]
  %v59 = vld [vmem:[%s0 + $0x78] sm:$0xff]
  %v60 = vld [vmem:[%s0 + $0x80] sm:$0xff]
  %v61 = vld [vmem:[%s0 + $0x88] sm:$0xf]
  %v62 = vld [vmem:[%s0 + $0x8c] sm:$0xff]
  %v63 = vld [vmem:[%s0 + $0x94] sm:$0xff]
  %v64 = vld [vmem:[%s0 + $0x9c] sm:$0xf]
  %v65 = vld [vmem:[%s0 + $0xa0] sm:$0xff]
  %v66 = vld [vmem:[%s0 + $0xa8] sm:$0xff]
  %v67 = vld [vmem:[%s0 + $0xb0] sm:$0xf]
  %v68 = vld [vmem:[%s0 + $0xb4] sm:$0xff]
  %v69 = vld [vmem:[%s0 + $0xbc] sm:$0xff]
  %v70 = vld [vmem:[%s0 + $0xc4] sm:$0xf]
  %v71 = vld [vmem:[%s0 + $0xc8] sm:$0xff]
  %v72 = vld [vmem:[%s0 + $0xd0] sm:$0xff]
  %v73 = vld [vmem:[%s0 + $0xd8] sm:$0xf]
  %v74 = vld [vmem:[%s0 + $0xdc] sm:$0xff]
  %v75 = vld [vmem:[%s0 + $0xe4] sm:$0xff]
  %v76 = vld [vmem:[%s0 + $0xec] sm:$0xf]
  %v77 = vld [vmem:[%s0 + $0xf0] sm:$0xff]
  %v78 = vld [vmem:[%s0 + $0xf8] sm:$0xff]
  %v79 = vld [vmem:[%s0 + $0x100] sm:$0xf]
  %v80 = vld [vmem:[%s0 + $0x104] sm:$0xff]
  %v81 = vld [vmem:[%s0 + $0x10c] sm:$0xff]
  %v82 = vld [vmem:[%s0 + $0x114] sm:$0xf]
  %v83 = vld [vmem:[%s0 + $0x118] sm:$0xff]
  %v84 = vld [vmem:[%s0 + $0x120] sm:$0xff]
  %v85 = vld [vmem:[%s0 + $0x128] sm:$0xf]
  %v86 = vld [vmem:[%s0 + $0x12c] sm:$0xff]
  %v87 = vld [vmem:[%s0 + $0x134] sm:$0xff]
  %v88 = vld [vmem:[%s0 + $0x13c] sm:$0xf]
  %v89 = vld [vmem:[%s1] sm:$0xf]
  %v90 = vld [vmem:[%s1 + $0x4] sm:$0xf]
  %v91 = vld [vmem:[%s1 + $0x8] sm:$0xf]
  %v92 = vld [vmem:[%s1 + $0xc] sm:$0xf]
  %v93 = vld [vmem:[%s1 + $0x10] sm:$0xf]
  %v94 = vld [vmem:[%s1 + $0x14] sm:$0xf]
  %v95 = vld [vmem:[%s1 + $0x18] sm:$0xf]
  %v96 = vld [vmem:[%s1 + $0x1c] sm:$0xf]
  %v97 = vld [vmem:[%s1 + $0x20] sm:$0xf]
  %v98 = vld [vmem:[%s1 + $0x24] sm:$0xf]
  %v99 = vld [vmem:[%s1 + $0x28] sm:$0xf]
  %v100 = vld [vmem:[%s1 + $0x2c] sm:$0xf]
  %v101 = vld [vmem:[%s1 + $0x30] sm:$0xf]
  %v102 = vld [vmem:[%s1 + $0x34] sm:$0xf]
  %v103 = vld [vmem:[%s1 + $0x38] sm:$0xf]
  %v104 = vld [vmem:[%s1 + $0x3c] sm:$0xf]
  %v105 = vld [vmem:[%s1 + $0x40] sm:$0xf]
  %v106 = vld [vmem:[%s1 + $0x44] sm:$0xf]
  %v107 = vld [vmem:[%s1 + $0x48] sm:$0xf]
  %v108 = vld [vmem:[%s1 + $0x4c] sm:$0xf]
  %v109 = vld [vmem:[%s1 + $0x50] sm:$0xf]
  %v110 = vld [vmem:[%s1 + $0x54] sm:$0xf]
  %v111 = vld [vmem:[%s1 + $0x58] sm:$0xf]
  %v112 = vld [vmem:[%s1 + $0x5c] sm:$0xf]
  %v113 = vld [vmem:[%s1 + $0x60] sm:$0xf]
  %v114 = vld [vmem:[%s1 + $0x64] sm:$0xf]
  %v115 = vld [vmem:[%s1 + $0x68] sm:$0xf]
  %v116 = vld [vmem:[%s1 + $0x6c] sm:$0xf]
  %v117 = vld [vmem:[%s1 + $0x70] sm:$0xf]
  %v118 = vld [vmem:[%s1 + $0x74] sm:$0xf]
  %v119 = vld [vmem:[%s1 + $0x78] sm:$0xf]
  %v120 = vld [vmem:[%s1 + $0x7c] sm:$0xf]
  %v121 = vld [vmem:[%s1 + $0x80] sm:$0xf]
  %v122 = vld [vmem:[%s1 + $0x84] sm:$0xf]
  %v123 = vld [vmem:[%s1 + $0x88] sm:$0xf]
  %v124 = vld [vmem:[%s1 + $0x8c] sm:$0xf]
  %v125 = vld [vmem:[%s1 + $0x90] sm:$0xf]
  %v126 = vld [vmem:[%s1 + $0x94] sm:$0xf]
  %v127 = vld [vmem:[%s1 + $0x98] sm:$0xf]
  %v128 = vld [vmem:[%s1 + $0x9c] sm:$0xf]
  %v129 = vld [vmem:[%s1 + $0xa0] sm:$0xf]
  %v130 = vld [vmem:[%s1 + $0xa4] sm:$0xf]
  %v131 = vld [vmem:[%s1 + $0xa8] sm:$0xf]
  %v132 = vld [vmem:[%s1 + $0xac] sm:$0xf]
  %v133 = vld [vmem:[%s1 + $0xb0] sm:$0xf]
  %v134 = vld [vmem:[%s1 + $0xb4] sm:$0xf]
  %v135 = vld [vmem:[%s1 + $0xb8] sm:$0xf]
  %v136 = vld [vmem:[%s1 + $0xbc] sm:$0xf]
  %v137 = vld [vmem:[%s1 + $0xc0] sm:$0xf]
  %v138 = vld [vmem:[%s1 + $0xc4] sm:$0xf]
  %v139 = vld [vmem:[%s1 + $0xc8] sm:$0xf]
  %v140 = vld [vmem:[%s1 + $0xcc] sm:$0xf]
  %v141 = vld [vmem:[%s1 + $0xd0] sm:$0xf]
  %v142 = vld [vmem:[%s1 + $0xd4] sm:$0xf]
  %v143 = vld [vmem:[%s1 + $0xd8] sm:$0xf]
  %v144 = vld [vmem:[%s1 + $0xdc] sm:$0xf]
  %v145 = vld [vmem:[%s1 + $0xe0] sm:$0xf]
  %v146 = vld [vmem:[%s1 + $0xe4] sm:$0xf]
  %v147 = vld [vmem:[%s1 + $0xe8] sm:$0xf]
  %v148 = vld [vmem:[%s1 + $0xec] sm:$0xf]
  %v149 = vld [vmem:[%s1 + $0xf0] sm:$0xf]
  %v150 = vld [vmem:[%s1 + $0xf4] sm:$0xf]
  %v151 = vld [vmem:[%s1 + $0xf8] sm:$0xf]
  %v152 = vld [vmem:[%s1 + $0xfc] sm:$0xf]
  %v153 = vld [vmem:[%s1 + $0x100] sm:$0xf]
  %v154 = vld [vmem:[%s1 + $0x104] sm:$0xf]
  %v155 = vld [vmem:[%s1 + $0x108] sm:$0xf]
  %v156 = vld [vmem:[%s1 + $0x10c] sm:$0xf]
  %v157 = vld [vmem:[%s1 + $0x110] sm:$0xf]
  %v158 = vld [vmem:[%s1 + $0x114] sm:$0xf]
  %v159 = vld [vmem:[%s1 + $0x118] sm:$0xf]
  %v160 = vld [vmem:[%s1 + $0x11c] sm:$0xf]
  %v161 = vld [vmem:[%s2] sm:$0x1]
  %v163 = vlaneseq
  %v164 = vshrl.u32 %v163, 7
  %v165 = vsub.s32 0, %v164
  %v166 = vrot.slane %v161, %v165
  %v216 = vunpack.c.l.b16 %v41
  %v217 = vunpack.c.h.b16 %v41
  %v218 = vunpack.c.l.b16 %v42
  %v219 = vunpack.c.h.b16 %v42
  %v220 = vunpack.c.l.b16 %v43
  %v221 = vunpack.c.l.b16 %v44
  %v222 = vunpack.c.h.b16 %v44
  %v223 = vunpack.c.l.b16 %v45
  %v224 = vunpack.c.h.b16 %v45
  %v225 = vunpack.c.l.b16 %v46
  %v226 = vunpack.c.l.b16 %v47
  %v227 = vunpack.c.h.b16 %v47
  %v228 = vunpack.c.l.b16 %v48
  %v229 = vunpack.c.h.b16 %v48
  %v230 = vunpack.c.l.b16 %v49
  %v231 = vunpack.c.l.b16 %v50
  %v232 = vunpack.c.h.b16 %v50
  %v233 = vunpack.c.l.b16 %v51
  %v234 = vunpack.c.h.b16 %v51
  %v235 = vunpack.c.l.b16 %v52
  %v236 = vunpack.c.l.b16 %v53
  %v237 = vunpack.c.h.b16 %v53
  %v238 = vunpack.c.l.b16 %v54
  %v239 = vunpack.c.h.b16 %v54
  %v240 = vunpack.c.l.b16 %v55
  %v241 = vunpack.c.l.b16 %v56
  %v242 = vunpack.c.h.b16 %v56
  %v243 = vunpack.c.l.b16 %v57
  %v244 = vunpack.c.h.b16 %v57
  %v245 = vunpack.c.l.b16 %v58
  %v246 = vunpack.c.l.b16 %v59
  %v247 = vunpack.c.h.b16 %v59
  %v248 = vunpack.c.l.b16 %v60
  %v249 = vunpack.c.h.b16 %v60
  %v250 = vunpack.c.l.b16 %v61
  %v251 = vunpack.c.l.b16 %v62
  %v252 = vunpack.c.h.b16 %v62
  %v253 = vunpack.c.l.b16 %v63
  %v254 = vunpack.c.h.b16 %v63
  %v255 = vunpack.c.l.b16 %v64
  %v256 = vunpack.c.l.b16 %v65
  %v257 = vunpack.c.h.b16 %v65
  %v258 = vunpack.c.l.b16 %v66
  %v259 = vunpack.c.h.b16 %v66
  %v260 = vunpack.c.l.b16 %v67
  %v261 = vunpack.c.l.b16 %v68
  %v262 = vunpack.c.h.b16 %v68
  %v263 = vunpack.c.l.b16 %v69
  %v264 = vunpack.c.h.b16 %v69
  %v265 = vunpack.c.l.b16 %v70
  %v266 = vunpack.c.l.b16 %v71
  %v267 = vunpack.c.h.b16 %v71
  %v268 = vunpack.c.l.b16 %v72
  %v269 = vunpack.c.h.b16 %v72
  %v270 = vunpack.c.l.b16 %v73
  %v271 = vunpack.c.l.b16 %v74
  %v272 = vunpack.c.h.b16 %v74
  %v273 = vunpack.c.l.b16 %v75
  %v274 = vunpack.c.h.b16 %v75
  %v275 = vunpack.c.l.b16 %v76
  %v276 = vunpack.c.l.b16 %v77
  %v277 = vunpack.c.h.b16 %v77
  %v278 = vunpack.c.l.b16 %v78
  %v279 = vunpack.c.h.b16 %v78
  %v280 = vunpack.c.l.b16 %v79
  %v281 = vunpack.c.l.b16 %v80
  %v282 = vunpack.c.h.b16 %v80
  %v283 = vunpack.c.l.b16 %v81
  %v284 = vunpack.c.h.b16 %v81
  %v285 = vunpack.c.l.b16 %v82
  %v286 = vunpack.c.l.b16 %v83
  %v287 = vunpack.c.h.b16 %v83
  %v288 = vunpack.c.l.b16 %v84
  %v289 = vunpack.c.h.b16 %v84
  %v290 = vunpack.c.l.b16 %v85
  %v291 = vunpack.c.l.b16 %v86
  %v292 = vunpack.c.h.b16 %v86
  %v293 = vunpack.c.l.b16 %v87
  %v294 = vunpack.c.h.b16 %v87
  %v295 = vunpack.c.l.b16 %v88
  %v296 = vpack.c.b16 %v221, %v216
  %v297 = vpack.c.b16 %v222, %v217
  %v298 = vpack.c.b16 %v223, %v218
  %v299 = vpack.c.b16 %v224, %v219
  %v300 = vpack.c.b16 %v225, %v220
  %v301 = vpack.c.b16 %v231, %v226
  %v302 = vpack.c.b16 %v232, %v227
  %v303 = vpack.c.b16 %v233, %v228
  %v304 = vpack.c.b16 %v234, %v229
  %v305 = vpack.c.b16 %v235, %v230
  %v306 = vpack.c.b16 %v241, %v236
  %v307 = vpack.c.b16 %v242, %v237
  %v308 = vpack.c.b16 %v243, %v238
  %v309 = vpack.c.b16 %v244, %v239
  %v310 = vpack.c.b16 %v245, %v240
  %v311 = vpack.c.b16 %v251, %v246
  %v312 = vpack.c.b16 %v252, %v247
  %v313 = vpack.c.b16 %v253, %v248
  %v314 = vpack.c.b16 %v254, %v249
  %v315 = vpack.c.b16 %v255, %v250
  %v316 = vpack.c.b16 %v261, %v256
  %v317 = vpack.c.b16 %v262, %v257
  %v318 = vpack.c.b16 %v263, %v258
  %v319 = vpack.c.b16 %v264, %v259
  %v320 = vpack.c.b16 %v265, %v260
  %v321 = vpack.c.b16 %v271, %v266
  %v322 = vpack.c.b16 %v272, %v267
  %v323 = vpack.c.b16 %v273, %v268
  %v324 = vpack.c.b16 %v274, %v269
  %v325 = vpack.c.b16 %v275, %v270
  %v326 = vpack.c.b16 %v281, %v276
  %v327 = vpack.c.b16 %v282, %v277
  %v328 = vpack.c.b16 %v283, %v278
  %v329 = vpack.c.b16 %v284, %v279
  %v330 = vpack.c.b16 %v285, %v280
  %v331 = vpack.c.b16 %v291, %v286
  %v332 = vpack.c.b16 %v292, %v287
  %v333 = vpack.c.b16 %v293, %v288
  %v334 = vpack.c.b16 %v294, %v289
  %v335 = vpack.c.b16 %v295, %v290
  %v440 = vunpack.c.l.b16 %v89
  %v441 = vunpack.c.l.b16 %v90
  %v442 = vunpack.c.l.b16 %v91
  %v443 = vunpack.c.l.b16 %v92
  %v444 = vunpack.c.l.b16 %v93
  %v445 = vunpack.c.l.b16 %v94
  %v446 = vunpack.c.l.b16 %v95
  %v447 = vunpack.c.l.b16 %v96
  %v448 = vunpack.c.l.b16 %v97
  %v449 = vunpack.c.l.b16 %v98
  %v450 = vunpack.c.l.b16 %v99
  %v451 = vunpack.c.l.b16 %v100
  %v452 = vunpack.c.l.b16 %v101
  %v453 = vunpack.c.l.b16 %v102
  %v454 = vunpack.c.l.b16 %v103
  %v455 = vunpack.c.l.b16 %v104
  %v456 = vunpack.c.l.b16 %v105
  %v457 = vunpack.c.l.b16 %v106
  %v458 = vunpack.c.l.b16 %v107
  %v459 = vunpack.c.l.b16 %v108
  %v460 = vunpack.c.l.b16 %v109
  %v461 = vunpack.c.l.b16 %v110
  %v462 = vunpack.c.l.b16 %v111
  %v463 = vunpack.c.l.b16 %v112
  %v464 = vunpack.c.l.b16 %v113
  %v465 = vunpack.c.l.b16 %v114
  %v466 = vunpack.c.l.b16 %v115
  %v467 = vunpack.c.l.b16 %v116
  %v468 = vunpack.c.l.b16 %v117
  %v469 = vunpack.c.l.b16 %v118
  %v470 = vunpack.c.l.b16 %v119
  %v471 = vunpack.c.l.b16 %v120
  %v472 = vunpack.c.l.b16 %v121
  %v473 = vunpack.c.l.b16 %v122
  %v474 = vunpack.c.l.b16 %v123
  %v475 = vunpack.c.l.b16 %v124
  %v476 = vunpack.c.l.b16 %v125
  %v477 = vunpack.c.l.b16 %v126
  %v478 = vunpack.c.l.b16 %v127
  %v479 = vunpack.c.l.b16 %v128
  %v480 = vunpack.c.l.b16 %v129
  %v481 = vunpack.c.l.b16 %v130
  %v482 = vunpack.c.l.b16 %v131
  %v483 = vunpack.c.l.b16 %v132
  %v484 = vunpack.c.l.b16 %v133
  %v485 = vunpack.c.l.b16 %v134
  %v486 = vunpack.c.l.b16 %v135
  %v487 = vunpack.c.l.b16 %v136
  %v488 = vunpack.c.l.b16 %v137
  %v489 = vunpack.c.l.b16 %v138
  %v490 = vunpack.c.l.b16 %v139
  %v491 = vunpack.c.l.b16 %v140
  %v492 = vunpack.c.l.b16 %v141
  %v493 = vunpack.c.l.b16 %v142
  %v494 = vunpack.c.l.b16 %v143
  %v495 = vunpack.c.l.b16 %v144
  %v496 = vunpack.c.l.b16 %v145
  %v497 = vunpack.c.l.b16 %v146
  %v498 = vunpack.c.l.b16 %v147
  %v499 = vunpack.c.l.b16 %v148
  %v500 = vunpack.c.l.b16 %v149
  %v501 = vunpack.c.l.b16 %v150
  %v502 = vunpack.c.l.b16 %v151
  %v503 = vunpack.c.l.b16 %v152
  %v504 = vunpack.c.l.b16 %v153
  %v505 = vunpack.c.l.b16 %v154
  %v506 = vunpack.c.l.b16 %v155
  %v507 = vunpack.c.l.b16 %v156
  %v508 = vunpack.c.l.b16 %v157
  %v509 = vunpack.c.l.b16 %v158
  %v510 = vunpack.c.l.b16 %v159
  %v511 = vunpack.c.l.b16 %v160
  %v512 = vpack.c.b16 %v441, %v440
  %v513 = vpack.c.b16 %v443, %v442
  %v514 = vpack.c.b16 %v445, %v444
  %v515 = vpack.c.b16 %v447, %v446
  %v516 = vpack.c.b16 %v449, %v448
  %v517 = vpack.c.b16 %v451, %v450
  %v518 = vpack.c.b16 %v453, %v452
  %v519 = vpack.c.b16 %v455, %v454
  %v520 = vpack.c.b16 %v457, %v456
  %v521 = vpack.c.b16 %v459, %v458
  %v522 = vpack.c.b16 %v461, %v460
  %v523 = vpack.c.b16 %v463, %v462
  %v524 = vpack.c.b16 %v465, %v464
  %v525 = vpack.c.b16 %v467, %v466
  %v526 = vpack.c.b16 %v469, %v468
  %v527 = vpack.c.b16 %v471, %v470
  %v528 = vpack.c.b16 %v473, %v472
  %v529 = vpack.c.b16 %v475, %v474
  %v530 = vpack.c.b16 %v477, %v476
  %v531 = vpack.c.b16 %v479, %v478
  %v532 = vpack.c.b16 %v481, %v480
  %v533 = vpack.c.b16 %v483, %v482
  %v534 = vpack.c.b16 %v485, %v484
  %v535 = vpack.c.b16 %v487, %v486
  %v536 = vpack.c.b16 %v489, %v488
  %v537 = vpack.c.b16 %v491, %v490
  %v538 = vpack.c.b16 %v493, %v492
  %v539 = vpack.c.b16 %v495, %v494
  %v540 = vpack.c.b16 %v497, %v496
  %v541 = vpack.c.b16 %v499, %v498
  %v542 = vpack.c.b16 %v501, %v500
  %v543 = vpack.c.b16 %v503, %v502
  %v544 = vpack.c.b16 %v505, %v504
  %v545 = vpack.c.b16 %v507, %v506
  %v546 = vpack.c.b16 %v509, %v508
  %v547 = vpack.c.b16 %v511, %v510
  %vm584 = vcmask 523264
  %v586 = vsel %vm584, %v300, 0
  %v589 = vsel %vm584, %v305, 0
  %v592 = vsel %vm584, %v310, 0
  %v595 = vsel %vm584, %v315, 0
  %v598 = vsel %vm584, %v320, 0
  %v601 = vsel %vm584, %v325, 0
  %v604 = vsel %vm584, %v330, 0
  %v607 = vsel %vm584, %v335, 0
  %609 = vmatprep.subr.bf16.mxu0 0
  %610 = vmatpush1.bf16.msra.mxu0 %v512
  %611 = vmatprep.subr.bf16.mxu0 0
  %612 = vmatpush1.bf16.msra.mxu0 %v513
  %613 = vmatprep.subr.bf16.mxu0 0
  %614 = vmatpush1.bf16.msra.mxu0 %v514
  %615 = vmatprep.subr.bf16.mxu0 0
  %616 = vmatpush1.bf16.msra.mxu0 %v515
  %617 = vmatprep.subr.bf16.mxu0 0
  %618 = vmatpush1.bf16.msra.mxu0 %v516
  %619 = vmatprep.subr.bf16.mxu0 0
  %620 = vmatpush1.bf16.msra.mxu0 %v517
  %621 = vmatprep.subr.bf16.mxu0 0
  %622 = vmatpush1.bf16.msra.mxu0 %v518
  %623 = vmatprep.subr.bf16.mxu0 0
  %624 = vmatpush1.bf16.msra.mxu0 %v519
  %625 = vmatprep.subr.bf16.mxu0 0
  %626 = vmatpush1.bf16.msra.mxu0 %v520
  %627 = vmatprep.subr.bf16.mxu0 0
  %628 = vmatpush1.bf16.msra.mxu0 %v521
  %629 = vmatprep.subr.bf16.mxu0 0
  %630 = vmatpush1.bf16.msra.mxu0 %v522
  %631 = vmatprep.subr.bf16.mxu0 0
  %632 = vmatpush1.bf16.msra.mxu0 %v523
  %633 = vmatprep.subr.bf16.mxu0 0
  %634 = vmatpush1.bf16.msra.mxu0 %v524
  %635 = vmatprep.subr.bf16.mxu0 0
  %636 = vmatpush1.bf16.msra.mxu0 %v525
  %637 = vmatprep.subr.bf16.mxu0 0
  %638 = vmatpush1.bf16.msra.mxu0 %v526
  %639 = vmatprep.subr.bf16.mxu0 0
  %640 = vmatpush1.bf16.msra.mxu0 %v527
  %641 = vmatprep.mubr.bf16.mxu0 %v297
  %642 = vmatmul.mubr.bf16.gmra.mrb[0].mxu0 %v296
  %v643 = vpop.f32.mrb[0].mxu0
  %v644 = vadd.f32 %v166, %v643
  %v645 = vpop.f32.mrb[0].mxu0
  %v646 = vpop.f32.mrb[0].mxu0
  %v647 = vadd.f32 %v166, %v646
  %v648 = vpop.f32.mrb[0].mxu0
  %649 = vmatprep.mubr.bf16.mxu0 %v302
  %650 = vmatmul.mubr.bf16.gmra.mrb[0].mxu0 %v301
  %v651 = vpop.f32.mrb[0].mxu0
  %v652 = vadd.f32 %v166, %v651
  %v653 = vpop.f32.mrb[0].mxu0
  %v654 = vpop.f32.mrb[0].mxu0
  %v655 = vadd.f32 %v166, %v654
  %v656 = vpop.f32.mrb[0].mxu0
  %657 = vmatprep.mubr.bf16.mxu0 %v307
  %658 = vmatmul.mubr.bf16.gmra.mrb[0].mxu0 %v306
  %v659 = vpop.f32.mrb[0].mxu0
  %v660 = vadd.f32 %v166, %v659
  %v661 = vpop.f32.mrb[0].mxu0
  %v662 = vpop.f32.mrb[0].mxu0
  %v663 = vadd.f32 %v166, %v662
  %v664 = vpop.f32.mrb[0].mxu0
  %665 = vmatprep.mubr.bf16.mxu0 %v312
  %666 = vmatmul.mubr.bf16.gmra.mrb[0].mxu0 %v311
  %v667 = vpop.f32.mrb[0].mxu0
  %v668 = vadd.f32 %v166, %v667
  %v669 = vpop.f32.mrb[0].mxu0
  %v670 = vpop.f32.mrb[0].mxu0
  %v671 = vadd.f32 %v166, %v670
  %v672 = vpop.f32.mrb[0].mxu0
  %673 = vmatprep.mubr.bf16.mxu0 %v317
  %674 = vmatmul.mubr.bf16.gmra.mrb[0].mxu0 %v316
  %v675 = vpop.f32.mrb[0].mxu0
  %v676 = vadd.f32 %v166, %v675
  %v677 = vpop.f32.mrb[0].mxu0
  %v678 = vpop.f32.mrb[0].mxu0
  %v679 = vadd.f32 %v166, %v678
  %v680 = vpop.f32.mrb[0].mxu0
  %681 = vmatprep.mubr.bf16.mxu0 %v322
  %682 = vmatmul.mubr.bf16.gmra.mrb[0].mxu0 %v321
  %v683 = vpop.f32.mrb[0].mxu0
  %v684 = vadd.f32 %v166, %v683
  %v685 = vpop.f32.mrb[0].mxu0
  %v686 = vpop.f32.mrb[0].mxu0
  %v687 = vadd.f32 %v166, %v686
  %v688 = vpop.f32.mrb[0].mxu0
  %689 = vmatprep.mubr.bf16.mxu0 %v327
  %690 = vmatmul.mubr.bf16.gmra.mrb[0].mxu0 %v326
  %v691 = vpop.f32.mrb[0].mxu0
  %v692 = vadd.f32 %v166, %v691
  %v693 = vpop.f32.mrb[0].mxu0
  %v694 = vpop.f32.mrb[0].mxu0
  %v695 = vadd.f32 %v166, %v694
  %v696 = vpop.f32.mrb[0].mxu0
  %697 = vmatprep.mubr.bf16.mxu0 %v332
  %698 = vmatmul.mubr.bf16.gmra.mrb[0].mxu0 %v331
  %v699 = vpop.f32.mrb[0].mxu0
  %v700 = vadd.f32 %v166, %v699
  %v701 = vpop.f32.mrb[0].mxu0
  %v702 = vpop.f32.mrb[0].mxu0
  %v703 = vadd.f32 %v166, %v702
  %v704 = vpop.f32.mrb[0].mxu0
  %705 = vdwg.mxu0
  %706 = vmatprep.subr.bf16.mxu0 0
  %707 = vmatpush1.bf16.msra.mxu0 %v528
  %708 = vmatprep.subr.bf16.mxu0 0
  %709 = vmatpush1.bf16.msra.mxu0 %v529
  %710 = vmatprep.subr.bf16.mxu0 0
  %711 = vmatpush1.bf16.msra.mxu0 %v530
  %712 = vmatprep.subr.bf16.mxu0 0
  %713 = vmatpush1.bf16.msra.mxu0 %v531
  %714 = vmatprep.subr.bf16.mxu0 0
  %715 = vmatpush1.bf16.msra.mxu0 %v532
  %716 = vmatprep.subr.bf16.mxu0 0
  %717 = vmatpush1.bf16.msra.mxu0 %v533
  %718 = vmatprep.subr.bf16.mxu0 0
  %719 = vmatpush1.bf16.msra.mxu0 %v534
  %720 = vmatprep.subr.bf16.mxu0 0
  %721 = vmatpush1.bf16.msra.mxu0 %v535
  %722 = vmatprep.subr.bf16.mxu0 0
  %723 = vmatpush1.bf16.msra.mxu0 %v536
  %724 = vmatprep.subr.bf16.mxu0 0
  %725 = vmatpush1.bf16.msra.mxu0 %v537
  %726 = vmatprep.subr.bf16.mxu0 0
  %727 = vmatpush1.bf16.msra.mxu0 %v538
  %728 = vmatprep.subr.bf16.mxu0 0
  %729 = vmatpush1.bf16.msra.mxu0 %v539
  %730 = vmatprep.subr.bf16.mxu0 0
  %731 = vmatpush1.bf16.msra.mxu0 %v540
  %732 = vmatprep.subr.bf16.mxu0 0
  %733 = vmatpush1.bf16.msra.mxu0 %v541
  %734 = vmatprep.subr.bf16.mxu0 0
  %735 = vmatpush1.bf16.msra.mxu0 %v542
  %736 = vmatprep.subr.bf16.mxu0 0
  %737 = vmatpush1.bf16.msra.mxu0 %v543
  %738 = vmatprep.mubr.bf16.mxu0 %v299
  %739 = vmatmul.mubr.bf16.gmra.mrb[0].mxu0 %v298
  %v740 = vpop.f32.mrb[0].mxu0
  %v741 = vadd.f32 %v644, %v740
  %v742 = vpop.f32.mrb[0].mxu0
  %v743 = vpop.f32.mrb[0].mxu0
  %v744 = vadd.f32 %v647, %v743
  %v745 = vpop.f32.mrb[0].mxu0
  %746 = vmatprep.mubr.bf16.mxu0 %v304
  %747 = vmatmul.mubr.bf16.gmra.mrb[0].mxu0 %v303
  %v748 = vpop.f32.mrb[0].mxu0
  %v749 = vadd.f32 %v652, %v748
  %v750 = vpop.f32.mrb[0].mxu0
  %v751 = vpop.f32.mrb[0].mxu0
  %v752 = vadd.f32 %v655, %v751
  %v753 = vpop.f32.mrb[0].mxu0
  %754 = vmatprep.mubr.bf16.mxu0 %v309
  %755 = vmatmul.mubr.bf16.gmra.mrb[0].mxu0 %v308
  %v756 = vpop.f32.mrb[0].mxu0
  %v757 = vadd.f32 %v660, %v756
  %v758 = vpop.f32.mrb[0].mxu0
  %v759 = vpop.f32.mrb[0].mxu0
  %v760 = vadd.f32 %v663, %v759
  %v761 = vpop.f32.mrb[0].mxu0
  %762 = vmatprep.mubr.bf16.mxu0 %v314
  %763 = vmatmul.mubr.bf16.gmra.mrb[0].mxu0 %v313
  %v764 = vpop.f32.mrb[0].mxu0
  %v765 = vadd.f32 %v668, %v764
  %v766 = vpop.f32.mrb[0].mxu0
  %v767 = vpop.f32.mrb[0].mxu0
  %v768 = vadd.f32 %v671, %v767
  %v769 = vpop.f32.mrb[0].mxu0
  %770 = vmatprep.mubr.bf16.mxu0 %v319
  %771 = vmatmul.mubr.bf16.gmra.mrb[0].mxu0 %v318
  %v772 = vpop.f32.mrb[0].mxu0
  %v773 = vadd.f32 %v676, %v772
  %v774 = vpop.f32.mrb[0].mxu0
  %v775 = vpop.f32.mrb[0].mxu0
  %v776 = vadd.f32 %v679, %v775
  %v777 = vpop.f32.mrb[0].mxu0
  %778 = vmatprep.mubr.bf16.mxu0 %v324
  %779 = vmatmul.mubr.bf16.gmra.mrb[0].mxu0 %v323
  %v780 = vpop.f32.mrb[0].mxu0
  %v781 = vadd.f32 %v684, %v780
  %v782 = vpop.f32.mrb[0].mxu0
  %v783 = vpop.f32.mrb[0].mxu0
  %v784 = vadd.f32 %v687, %v783
  %v785 = vpop.f32.mrb[0].mxu0
  %786 = vmatprep.mubr.bf16.mxu0 %v329
  %787 = vmatmul.mubr.bf16.gmra.mrb[0].mxu0 %v328
  %v788 = vpop.f32.mrb[0].mxu0
  %v789 = vadd.f32 %v692, %v788
  %v790 = vpop.f32.mrb[0].mxu0
  %v791 = vpop.f32.mrb[0].mxu0
  %v792 = vadd.f32 %v695, %v791
  %v793 = vpop.f32.mrb[0].mxu0
  %794 = vmatprep.mubr.bf16.mxu0 %v334
  %795 = vmatmul.mubr.bf16.gmra.mrb[0].mxu0 %v333
  %v796 = vpop.f32.mrb[0].mxu0
  %v797 = vadd.f32 %v700, %v796
  %v798 = vpop.f32.mrb[0].mxu0
  %v799 = vpop.f32.mrb[0].mxu0
  %v800 = vadd.f32 %v703, %v799
  %v801 = vpop.f32.mrb[0].mxu0
  %802 = vdwg.mxu0
  %803 = vmatprep.subr.bf16.mxu0 0
  %804 = vmatpush1.bf16.msra.mxu0 %v544
  %805 = vmatprep.subr.bf16.mxu0 0
  %806 = vmatpush1.bf16.msra.mxu0 %v545
  %807 = vmatprep.subr.bf16.mxu0 0
  %808 = vmatpush1.bf16.msra.mxu0 %v546
  %809 = vmatprep.subr.bf16.mxu0 0
  %810 = vmatpush1.bf16.msra.mxu0 %v547
  %811 = vmatprep.subr.bf16.mxu0 0
  %812 = vmatpush1.bf16.msra.mxu0 0
  %813 = vmatprep.subr.bf16.mxu0 0
  %814 = vmatpush1.bf16.msra.mxu0 0
  %815 = vmatprep.subr.bf16.mxu0 0
  %816 = vmatpush1.bf16.msra.mxu0 0
  %817 = vmatprep.subr.bf16.mxu0 0
  %818 = vmatpush1.bf16.msra.mxu0 0
  %819 = vmatprep.subr.bf16.mxu0 0
  %820 = vmatpush1.bf16.msra.mxu0 0
  %821 = vmatprep.subr.bf16.mxu0 0
  %822 = vmatpush1.bf16.msra.mxu0 0
  %823 = vmatprep.subr.bf16.mxu0 0
  %824 = vmatpush1.bf16.msra.mxu0 0
  %825 = vmatprep.subr.bf16.mxu0 0
  %826 = vmatpush1.bf16.msra.mxu0 0
  %827 = vmatprep.subr.bf16.mxu0 0
  %828 = vmatpush1.bf16.msra.mxu0 0
  %829 = vmatprep.subr.bf16.mxu0 0
  %830 = vmatpush1.bf16.msra.mxu0 0
  %831 = vmatprep.subr.bf16.mxu0 0
  %832 = vmatpush1.bf16.msra.mxu0 0
  %833 = vmatprep.subr.bf16.mxu0 0
  %834 = vmatpush1.bf16.msra.mxu0 0
  %835 = vmatprep.mubr.bf16.mxu0 0
  %836 = vmatmul.mubr.bf16.gmra.mrb[0].mxu0 %v586
  %v837 = vpop.f32.mrb[0].mxu0
  %v838 = vadd.f32 %v741, %v837
  %v839 = vpop.f32.mrb[0].mxu0
  %v840 = vpop.f32.mrb[0].mxu0
  %v841 = vadd.f32 %v744, %v840
  %v842 = vpop.f32.mrb[0].mxu0
  %843 = vmatprep.mubr.bf16.mxu0 0
  %844 = vmatmul.mubr.bf16.gmra.mrb[0].mxu0 %v589
  %v845 = vpop.f32.mrb[0].mxu0
  %v846 = vadd.f32 %v749, %v845
  %v847 = vpop.f32.mrb[0].mxu0
  %v848 = vpop.f32.mrb[0].mxu0
  %v849 = vadd.f32 %v752, %v848
  %v850 = vpop.f32.mrb[0].mxu0
  %851 = vmatprep.mubr.bf16.mxu0 0
  %852 = vmatmul.mubr.bf16.gmra.mrb[0].mxu0 %v592
  %v853 = vpop.f32.mrb[0].mxu0
  %v854 = vadd.f32 %v757, %v853
  %v855 = vpop.f32.mrb[0].mxu0
  %v856 = vpop.f32.mrb[0].mxu0
  %v857 = vadd.f32 %v760, %v856
  %v858 = vpop.f32.mrb[0].mxu0
  %859 = vmatprep.mubr.bf16.mxu0 0
  %860 = vmatmul.mubr.bf16.gmra.mrb[0].mxu0 %v595
  %v861 = vpop.f32.mrb[0].mxu0
  %v862 = vadd.f32 %v765, %v861
  %v863 = vpop.f32.mrb[0].mxu0
  %v864 = vpop.f32.mrb[0].mxu0
  %v865 = vadd.f32 %v768, %v864
  %v866 = vpop.f32.mrb[0].mxu0
  %867 = vmatprep.mubr.bf16.mxu0 0
  %868 = vmatmul.mubr.bf16.gmra.mrb[0].mxu0 %v598
  %v869 = vpop.f32.mrb[0].mxu0
  %v870 = vadd.f32 %v773, %v869
  %v871 = vpop.f32.mrb[0].mxu0
  %v872 = vpop.f32.mrb[0].mxu0
  %v873 = vadd.f32 %v776, %v872
  %v874 = vpop.f32.mrb[0].mxu0
  %875 = vmatprep.mubr.bf16.mxu0 0
  %876 = vmatmul.mubr.bf16.gmra.mrb[0].mxu0 %v601
  %v877 = vpop.f32.mrb[0].mxu0
  %v878 = vadd.f32 %v781, %v877
  %v879 = vpop.f32.mrb[0].mxu0
  %v880 = vpop.f32.mrb[0].mxu0
  %v881 = vadd.f32 %v784, %v880
  %v882 = vpop.f32.mrb[0].mxu0
  %883 = vmatprep.mubr.bf16.mxu0 0
  %884 = vmatmul.mubr.bf16.gmra.mrb[0].mxu0 %v604
  %v885 = vpop.f32.mrb[0].mxu0
  %v886 = vadd.f32 %v789, %v885
  %v887 = vpop.f32.mrb[0].mxu0
  %v888 = vpop.f32.mrb[0].mxu0
  %v889 = vadd.f32 %v792, %v888
  %v890 = vpop.f32.mrb[0].mxu0
  %891 = vmatprep.mubr.bf16.mxu0 0
  %892 = vmatmul.mubr.bf16.gmra.mrb[0].mxu0 %v607
  %v893 = vpop.f32.mrb[0].mxu0
  %v894 = vadd.f32 %v797, %v893
  %v895 = vpop.f32.mrb[0].mxu0
  %v896 = vpop.f32.mrb[0].mxu0
  %v897 = vadd.f32 %v800, %v896
  %v898 = vpop.f32.mrb[0].mxu0
  %899 = vdwg.mxu0
  %v900 = vmax.f32 %v838, 0.0
  %v901 = vmax.f32 %v841, 0.0
  %v902 = vmax.f32 %v846, 0.0
  %v903 = vmax.f32 %v849, 0.0
  %v904 = vmax.f32 %v854, 0.0
  %v905 = vmax.f32 %v857, 0.0
  %v906 = vmax.f32 %v862, 0.0
  %v907 = vmax.f32 %v865, 0.0
  %v908 = vmax.f32 %v870, 0.0
  %v909 = vmax.f32 %v873, 0.0
  %v910 = vmax.f32 %v878, 0.0
  %v911 = vmax.f32 %v881, 0.0
  %v912 = vmax.f32 %v886, 0.0
  %v913 = vmax.f32 %v889, 0.0
  %v914 = vmax.f32 %v894, 0.0
  %v915 = vmax.f32 %v897, 0.0
  %v916 = vpack.c.bf16 %v901, %v900
  %v917 = vpack.c.bf16 %v902, %v901
  %v918 = vpack.c.bf16 %v905, %v904
  %v919 = vpack.c.bf16 %v906, %v905
  %v920 = vpack.c.bf16 %v902, %v902
  %v921 = vpack.c.bf16 %v903, %v903
  %v922 = vpack.c.bf16 %v906, %v906
  %v923 = vpack.c.bf16 %v907, %v907
  %v924 = vld [vmem:[%s3] sm:$0xf]
  %v925 = vld [vmem:[%s3 + $0x4] sm:$0xf]
  %v926 = vld [vmem:[%s3 + $0x8] sm:$0xf]
  %v927 = vld [vmem:[%s3 + $0xc] sm:$0xf]
  %v928 = vld [vmem:[%s3 + $0x10] sm:$0xf]
  %v929 = vld [vmem:[%s3 + $0x14] sm:$0xf]
  %v930 = vld [vmem:[%s3 + $0x18] sm:$0xf]
  %v931 = vld [vmem:[%s3 + $0x1c] sm:$0xf]
  %v932 = vld [vmem:[%s3 + $0x20] sm:$0xf]
  %v933 = vld [vmem:[%s3 + $0x24] sm:$0xf]
  %v934 = vld [vmem:[%s3 + $0x28] sm:$0xf]
  %v935 = vld [vmem:[%s3 + $0x2c] sm:$0xf]
  %v936 = vld [vmem:[%s3 + $0x30] sm:$0xf]
  %v937 = vld [vmem:[%s3 + $0x34] sm:$0xf]
  %v938 = vld [vmem:[%s3 + $0x38] sm:$0xf]
  %v939 = vld [vmem:[%s3 + $0x3c] sm:$0xf]
  %v940 = vld [vmem:[%s3 + $0x40] sm:$0xf]
  %v941 = vld [vmem:[%s3 + $0x44] sm:$0xf]
  %v942 = vld [vmem:[%s3 + $0x48] sm:$0xf]
  %v943 = vld [vmem:[%s3 + $0x4c] sm:$0xf]
  %v944 = vld [vmem:[%s3 + $0x50] sm:$0xf]
  %v945 = vld [vmem:[%s3 + $0x54] sm:$0xf]
  %v946 = vld [vmem:[%s3 + $0x58] sm:$0xf]
  %v947 = vld [vmem:[%s3 + $0x5c] sm:$0xf]
  %v948 = vld [vmem:[%s3 + $0x60] sm:$0xf]
  %v949 = vld [vmem:[%s3 + $0x64] sm:$0xf]
  %v950 = vld [vmem:[%s3 + $0x68] sm:$0xf]
  %v951 = vld [vmem:[%s3 + $0x6c] sm:$0xf]
  %v952 = vld [vmem:[%s3 + $0x70] sm:$0xf]
  %v953 = vld [vmem:[%s3 + $0x74] sm:$0xf]
  %v954 = vld [vmem:[%s3 + $0x78] sm:$0xf]
  %v955 = vld [vmem:[%s3 + $0x7c] sm:$0xf]
  %v956 = vld [vmem:[%s3 + $0x80] sm:$0xf]
  %v957 = vld [vmem:[%s3 + $0x84] sm:$0xf]
  %v958 = vld [vmem:[%s3 + $0x88] sm:$0xf]
  %v959 = vld [vmem:[%s3 + $0x8c] sm:$0xf]
  %v960 = vld [vmem:[%s3 + $0x90] sm:$0xf]
  %v961 = vld [vmem:[%s3 + $0x94] sm:$0xf]
  %v962 = vld [vmem:[%s3 + $0x98] sm:$0xf]
  %v963 = vld [vmem:[%s3 + $0x9c] sm:$0xf]
  %v964 = vld [vmem:[%s3 + $0xa0] sm:$0xf]
  %v965 = vld [vmem:[%s3 + $0xa4] sm:$0xf]
  %v966 = vld [vmem:[%s3 + $0xa8] sm:$0xf]
  %v967 = vld [vmem:[%s3 + $0xac] sm:$0xf]
  %v968 = vld [vmem:[%s3 + $0xb0] sm:$0xf]
  %v969 = vld [vmem:[%s3 + $0xb4] sm:$0xf]
  %v970 = vld [vmem:[%s3 + $0xb8] sm:$0xf]
  %v971 = vld [vmem:[%s3 + $0xbc] sm:$0xf]
  %v972 = vld [vmem:[%s3 + $0xc0] sm:$0xf]
  %v973 = vld [vmem:[%s3 + $0xc4] sm:$0xf]
  %v974 = vld [vmem:[%s3 + $0xc8] sm:$0xf]
  %v975 = vld [vmem:[%s3 + $0xcc] sm:$0xf]
  %v976 = vld [vmem:[%s3 + $0xd0] sm:$0xf]
  %v977 = vld [vmem:[%s3 + $0xd4] sm:$0xf]
  %v978 = vld [vmem:[%s3 + $0xd8] sm:$0xf]
  %v979 = vld [vmem:[%s3 + $0xdc] sm:$0xf]
  %v980 = vld [vmem:[%s3 + $0xe0] sm:$0xf]
  %v981 = vld [vmem:[%s3 + $0xe4] sm:$0xf]
  %v982 = vld [vmem:[%s3 + $0xe8] sm:$0xf]
  %v983 = vld [vmem:[%s3 + $0xec] sm:$0xf]
  %v984 = vld [vmem:[%s3 + $0xf0] sm:$0xf]
  %v985 = vld [vmem:[%s3 + $0xf4] sm:$0xf]
  %v986 = vld [vmem:[%s3 + $0xf8] sm:$0xf]
  %v987 = vld [vmem:[%s3 + $0xfc] sm:$0xf]
  %v988 = vld [vmem:[%s4] sm:$0x1]
  %v990 = vlaneseq
  %v991 = vshrl.u32 %v990, 7
  %v992 = vsub.s32 0, %v991
  %v993 = vrot.slane %v988, %v992
  %v1059 = vunpack.c.l.b16 %v924
  %v1060 = vunpack.c.l.b16 %v925
  %v1061 = vunpack.c.l.b16 %v926
  %v1062 = vunpack.c.l.b16 %v927
  %v1063 = vunpack.c.l.b16 %v928
  %v1064 = vunpack.c.l.b16 %v929
  %v1065 = vunpack.c.l.b16 %v930
  %v1066 = vunpack.c.l.b16 %v931
  %v1067 = vunpack.c.l.b16 %v932
  %v1068 = vunpack.c.l.b16 %v933
  %v1069 = vunpack.c.l.b16 %v934
  %v1070 = vunpack.c.l.b16 %v935
  %v1071 = vunpack.c.l.b16 %v936
  %v1072 = vunpack.c.l.b16 %v937
  %v1073 = vunpack.c.l.b16 %v938
  %v1074 = vunpack.c.l.b16 %v939
  %v1075 = vunpack.c.l.b16 %v940
  %v1076 = vunpack.c.l.b16 %v941
  %v1077 = vunpack.c.l.b16 %v942
  %v1078 = vunpack.c.l.b16 %v943
  %v1079 = vunpack.c.l.b16 %v944
  %v1080 = vunpack.c.l.b16 %v945
  %v1081 = vunpack.c.l.b16 %v946
  %v1082 = vunpack.c.l.b16 %v947
  %v1083 = vunpack.c.l.b16 %v948
  %v1084 = vunpack.c.l.b16 %v949
  %v1085 = vunpack.c.l.b16 %v950
  %v1086 = vunpack.c.l.b16 %v951
  %v1087 = vunpack.c.l.b16 %v952
  %v1088 = vunpack.c.l.b16 %v953
  %v1089 = vunpack.c.l.b16 %v954
  %v1090 = vunpack.c.l.b16 %v955
  %v1091 = vunpack.c.l.b16 %v956
  %v1092 = vunpack.c.l.b16 %v957
  %v1093 = vunpack.c.l.b16 %v958
  %v1094 = vunpack.c.l.b16 %v959
  %v1095 = vunpack.c.l.b16 %v960
  %v1096 = vunpack.c.l.b16 %v961
  %v1097 = vunpack.c.l.b16 %v962
  %v1098 = vunpack.c.l.b16 %v963
  %v1099 = vunpack.c.l.b16 %v964
  %v1100 = vunpack.c.l.b16 %v965
  %v1101 = vunpack.c.l.b16 %v966
  %v1102 = vunpack.c.l.b16 %v967
  %v1103 = vunpack.c.l.b16 %v968
  %v1104 = vunpack.c.l.b16 %v969
  %v1105 = vunpack.c.l.b16 %v970
  %v1106 = vunpack.c.l.b16 %v971
  %v1107 = vunpack.c.l.b16 %v972
  %v1108 = vunpack.c.l.b16 %v973
  %v1109 = vunpack.c.l.b16 %v974
  %v1110 = vunpack.c.l.b16 %v975
  %v1111 = vunpack.c.l.b16 %v976
  %v1112 = vunpack.c.l.b16 %v977
  %v1113 = vunpack.c.l.b16 %v978
  %v1114 = vunpack.c.l.b16 %v979
  %v1115 = vunpack.c.l.b16 %v980
  %v1116 = vunpack.c.l.b16 %v981
  %v1117 = vunpack.c.l.b16 %v982
  %v1118 = vunpack.c.l.b16 %v983
  %v1119 = vunpack.c.l.b16 %v984
  %v1120 = vunpack.c.l.b16 %v985
  %v1121 = vunpack.c.l.b16 %v986
  %v1122 = vunpack.c.l.b16 %v987
  %v1123 = vpack.c.b16 %v1060, %v1059
  %v1124 = vpack.c.b16 %v1062, %v1061
  %v1125 = vpack.c.b16 %v1064, %v1063
  %v1126 = vpack.c.b16 %v1066, %v1065
  %v1127 = vpack.c.b16 %v1068, %v1067
  %v1128 = vpack.c.b16 %v1070, %v1069
  %v1129 = vpack.c.b16 %v1072, %v1071
  %v1130 = vpack.c.b16 %v1074, %v1073
  %v1131 = vpack.c.b16 %v1076, %v1075
  %v1132 = vpack.c.b16 %v1078, %v1077
  %v1133 = vpack.c.b16 %v1080, %v1079
  %v1134 = vpack.c.b16 %v1082, %v1081
  %v1135 = vpack.c.b16 %v1084, %v1083
  %v1136 = vpack.c.b16 %v1086, %v1085
  %v1137 = vpack.c.b16 %v1088, %v1087
  %v1138 = vpack.c.b16 %v1090, %v1089
  %v1139 = vpack.c.b16 %v1092, %v1091
  %v1140 = vpack.c.b16 %v1094, %v1093
  %v1141 = vpack.c.b16 %v1096, %v1095
  %v1142 = vpack.c.b16 %v1098, %v1097
  %v1143 = vpack.c.b16 %v1100, %v1099
  %v1144 = vpack.c.b16 %v1102, %v1101
  %v1145 = vpack.c.b16 %v1104, %v1103
  %v1146 = vpack.c.b16 %v1106, %v1105
  %v1147 = vpack.c.b16 %v1108, %v1107
  %v1148 = vpack.c.b16 %v1110, %v1109
  %v1149 = vpack.c.b16 %v1112, %v1111
  %v1150 = vpack.c.b16 %v1114, %v1113
  %v1151 = vpack.c.b16 %v1116, %v1115
  %v1152 = vpack.c.b16 %v1118, %v1117
  %v1153 = vpack.c.b16 %v1120, %v1119
  %v1154 = vpack.c.b16 %v1122, %v1121
  %1187 = vmatprep.subr.bf16.mxu0 0
  %1188 = vmatpush1.bf16.msra.mxu0 %v1123
  %1189 = vmatprep.subr.bf16.mxu0 0
  %1190 = vmatpush1.bf16.msra.mxu0 %v1124
  %1191 = vmatprep.subr.bf16.mxu0 0
  %1192 = vmatpush1.bf16.msra.mxu0 %v1125
  %1193 = vmatprep.subr.bf16.mxu0 0
  %1194 = vmatpush1.bf16.msra.mxu0 %v1126
  %1195 = vmatprep.subr.bf16.mxu0 0
  %1196 = vmatpush1.bf16.msra.mxu0 %v1127
  %1197 = vmatprep.subr.bf16.mxu0 0
  %1198 = vmatpush1.bf16.msra.mxu0 %v1128
  %1199 = vmatprep.subr.bf16.mxu0 0
  %1200 = vmatpush1.bf16.msra.mxu0 %v1129
  %1201 = vmatprep.subr.bf16.mxu0 0
  %1202 = vmatpush1.bf16.msra.mxu0 %v1130
  %1203 = vmatprep.subr.bf16.mxu0 0
  %1204 = vmatpush1.bf16.msra.mxu0 %v1131
  %1205 = vmatprep.subr.bf16.mxu0 0
  %1206 = vmatpush1.bf16.msra.mxu0 %v1132
  %1207 = vmatprep.subr.bf16.mxu0 0
  %1208 = vmatpush1.bf16.msra.mxu0 %v1133
  %1209 = vmatprep.subr.bf16.mxu0 0
  %1210 = vmatpush1.bf16.msra.mxu0 %v1134
  %1211 = vmatprep.subr.bf16.mxu0 0
  %1212 = vmatpush1.bf16.msra.mxu0 %v1135
  %1213 = vmatprep.subr.bf16.mxu0 0
  %1214 = vmatpush1.bf16.msra.mxu0 %v1136
  %1215 = vmatprep.subr.bf16.mxu0 0
  %1216 = vmatpush1.bf16.msra.mxu0 %v1137
  %1217 = vmatprep.subr.bf16.mxu0 0
  %1218 = vmatpush1.bf16.msra.mxu0 %v1138
  %1219 = vmatprep.mubr.bf16.mxu0 %v917
  %1220 = vmatmul.mubr.bf16.gmra.mrb[0].mxu0 %v916
  %v1221 = vpop.f32.mrb[0].mxu0
  %v1222 = vadd.f32 %v993, %v1221
  %v1223 = vpop.f32.mrb[0].mxu0
  %v1224 = vpop.f32.mrb[0].mxu0
  %v1225 = vadd.f32 %v993, %v1224
  %v1226 = vpop.f32.mrb[0].mxu0
  %1227 = vmatprep.mubr.bf16.mxu0 %v921
  %1228 = vmatmul.mubr.bf16.gmra.mrb[0].mxu0 %v920
  %v1229 = vpop.f32.mrb[0].mxu0
  %v1230 = vadd.f32 %v993, %v1229
  %v1231 = vpop.f32.mrb[0].mxu0
  %v1232 = vpop.f32.mrb[0].mxu0
  %v1233 = vpop.f32.mrb[0].mxu0
  %1234 = vdwg.mxu0
  %1235 = vmatprep.subr.bf16.mxu0 0
  %1236 = vmatpush1.bf16.msra.mxu0 %v1139
  %1237 = vmatprep.subr.bf16.mxu0 0
  %1238 = vmatpush1.bf16.msra.mxu0 %v1140
  %1239 = vmatprep.subr.bf16.mxu0 0
  %1240 = vmatpush1.bf16.msra.mxu0 %v1141
  %1241 = vmatprep.subr.bf16.mxu0 0
  %1242 = vmatpush1.bf16.msra.mxu0 %v1142
  %1243 = vmatprep.subr.bf16.mxu0 0
  %1244 = vmatpush1.bf16.msra.mxu0 %v1143
  %1245 = vmatprep.subr.bf16.mxu0 0
  %1246 = vmatpush1.bf16.msra.mxu0 %v1144
  %1247 = vmatprep.subr.bf16.mxu0 0
  %1248 = vmatpush1.bf16.msra.mxu0 %v1145
  %1249 = vmatprep.subr.bf16.mxu0 0
  %1250 = vmatpush1.bf16.msra.mxu0 %v1146
  %1251 = vmatprep.subr.bf16.mxu0 0
  %1252 = vmatpush1.bf16.msra.mxu0 %v1147
  %1253 = vmatprep.subr.bf16.mxu0 0
  %1254 = vmatpush1.bf16.msra.mxu0 %v1148
  %1255 = vmatprep.subr.bf16.mxu0 0
  %1256 = vmatpush1.bf16.msra.mxu0 %v1149
  %1257 = vmatprep.subr.bf16.mxu0 0
  %1258 = vmatpush1.bf16.msra.mxu0 %v1150
  %1259 = vmatprep.subr.bf16.mxu0 0
  %1260 = vmatpush1.bf16.msra.mxu0 %v1151
  %1261 = vmatprep.subr.bf16.mxu0 0
  %1262 = vmatpush1.bf16.msra.mxu0 %v1152
  %1263 = vmatprep.subr.bf16.mxu0 0
  %1264 = vmatpush1.bf16.msra.mxu0 %v1153
  %1265 = vmatprep.subr.bf16.mxu0 0
  %1266 = vmatpush1.bf16.msra.mxu0 %v1154
  %1267 = vmatprep.mubr.bf16.mxu0 %v919
  %1268 = vmatmul.mubr.bf16.gmra.mrb[0].mxu0 %v918
  %v1269 = vpop.f32.mrb[0].mxu0
  %v1270 = vadd.f32 %v1222, %v1269
  %v1271 = vpop.f32.mrb[0].mxu0
  %v1272 = vpop.f32.mrb[0].mxu0
  %v1273 = vadd.f32 %v1225, %v1272
  %v1274 = vpop.f32.mrb[0].mxu0
  %1275 = vmatprep.mubr.bf16.mxu0 %v923
  %1276 = vmatmul.mubr.bf16.gmra.mrb[0].mxu0 %v922
  %v1277 = vpop.f32.mrb[0].mxu0
  %v1278 = vadd.f32 %v1230, %v1277
  %v1279 = vpop.f32.mrb[0].mxu0
  %v1280 = vpop.f32.mrb[0].mxu0
  %v1281 = vpop.f32.mrb[0].mxu0
  %1282 = vdwg.mxu0
  %v1283 = vmax.f32 %v1270, 0.0
  %v1284 = vmax.f32 %v1273, 0.0
  %v1285 = vmax.f32 %v1278, 0.0
  %v1286 = vpack.c.bf16 %v909, %v908
  %v1287 = vpack.c.bf16 %v910, %v909
  %v1288 = vpack.c.bf16 %v910, %v910
  %v1289 = vpack.c.bf16 %v911, %v911
  %1290 = vmatprep.subr.bf16.mxu0 0
  %1291 = vmatpush1.bf16.msra.mxu0 %v1123
  %1292 = vmatprep.subr.bf16.mxu0 0
  %1293 = vmatpush1.bf16.msra.mxu0 %v1124
  %1294 = vmatprep.subr.bf16.mxu0 0
  %1295 = vmatpush1.bf16.msra.mxu0 %v1125
  %1296 = vmatprep.subr.bf16.mxu0 0
  %1297 = vmatpush1.bf16.msra.mxu0 %v1126
  %1298 = vmatprep.subr.bf16.mxu0 0
  %1299 = vmatpush1.bf16.msra.mxu0 %v1127
  %1300 = vmatprep.subr.bf16.mxu0 0
  %1301 = vmatpush1.bf16.msra.mxu0 %v1128
  %1302 = vmatprep.subr.bf16.mxu0 0
  %1303 = vmatpush1.bf16.msra.mxu0 %v1129
  %1304 = vmatprep.subr.bf16.mxu0 0
  %1305 = vmatpush1.bf16.msra.mxu0 %v1130
  %1306 = vmatprep.subr.bf16.mxu0 0
  %1307 = vmatpush1.bf16.msra.mxu0 %v1131
  %1308 = vmatprep.subr.bf16.mxu0 0
  %1309 = vmatpush1.bf16.msra.mxu0 %v1132
  %1310 = vmatprep.subr.bf16.mxu0 0
  %1311 = vmatpush1.bf16.msra.mxu0 %v1133
  %1312 = vmatprep.subr.bf16.mxu0 0
  %1313 = vmatpush1.bf16.msra.mxu0 %v1134
  %1314 = vmatprep.subr.bf16.mxu0 0
  %1315 = vmatpush1.bf16.msra.mxu0 %v1135
  %1316 = vmatprep.subr.bf16.mxu0 0
  %1317 = vmatpush1.bf16.msra.mxu0 %v1136
  %1318 = vmatprep.subr.bf16.mxu0 0
  %1319 = vmatpush1.bf16.msra.mxu0 %v1137
  %1320 = vmatprep.subr.bf16.mxu0 0
  %1321 = vmatpush1.bf16.msra.mxu0 %v1138
  %1322 = vmatprep.mubr.bf16.mxu0 %v919
  %1323 = vmatmul.mubr.bf16.gmra.mrb[0].mxu0 %v918
  %v1324 = vpop.f32.mrb[0].mxu0
  %v1325 = vadd.f32 %v993, %v1324
  %v1326 = vpop.f32.mrb[0].mxu0
  %v1327 = vpop.f32.mrb[0].mxu0
  %v1328 = vadd.f32 %v993, %v1327
  %v1329 = vpop.f32.mrb[0].mxu0
  %1330 = vmatprep.mubr.bf16.mxu0 %v923
  %1331 = vmatmul.mubr.bf16.gmra.mrb[0].mxu0 %v922
  %v1332 = vpop.f32.mrb[0].mxu0
  %v1333 = vadd.f32 %v993, %v1332
  %v1334 = vpop.f32.mrb[0].mxu0
  %v1335 = vpop.f32.mrb[0].mxu0
  %v1336 = vpop.f32.mrb[0].mxu0
  %1337 = vdwg.mxu0
  %1338 = vmatprep.subr.bf16.mxu0 0
  %1339 = vmatpush1.bf16.msra.mxu0 %v1139
  %1340 = vmatprep.subr.bf16.mxu0 0
  %1341 = vmatpush1.bf16.msra.mxu0 %v1140
  %1342 = vmatprep.subr.bf16.mxu0 0
  %1343 = vmatpush1.bf16.msra.mxu0 %v1141
  %1344 = vmatprep.subr.bf16.mxu0 0
  %1345 = vmatpush1.bf16.msra.mxu0 %v1142
  %1346 = vmatprep.subr.bf16.mxu0 0
  %1347 = vmatpush1.bf16.msra.mxu0 %v1143
  %1348 = vmatprep.subr.bf16.mxu0 0
  %1349 = vmatpush1.bf16.msra.mxu0 %v1144
  %1350 = vmatprep.subr.bf16.mxu0 0
  %1351 = vmatpush1.bf16.msra.mxu0 %v1145
  %1352 = vmatprep.subr.bf16.mxu0 0
  %1353 = vmatpush1.bf16.msra.mxu0 %v1146
  %1354 = vmatprep.subr.bf16.mxu0 0
  %1355 = vmatpush1.bf16.msra.mxu0 %v1147
  %1356 = vmatprep.subr.bf16.mxu0 0
  %1357 = vmatpush1.bf16.msra.mxu0 %v1148
  %1358 = vmatprep.subr.bf16.mxu0 0
  %1359 = vmatpush1.bf16.msra.mxu0 %v1149
  %1360 = vmatprep.subr.bf16.mxu0 0
  %1361 = vmatpush1.bf16.msra.mxu0 %v1150
  %1362 = vmatprep.subr.bf16.mxu0 0
  %1363 = vmatpush1.bf16.msra.mxu0 %v1151
  %1364 = vmatprep.subr.bf16.mxu0 0
  %1365 = vmatpush1.bf16.msra.mxu0 %v1152
  %1366 = vmatprep.subr.bf16.mxu0 0
  %1367 = vmatpush1.bf16.msra.mxu0 %v1153
  %1368 = vmatprep.subr.bf16.mxu0 0
  %1369 = vmatpush1.bf16.msra.mxu0 %v1154
  %1370 = vmatprep.mubr.bf16.mxu0 %v1287
  %1371 = vmatmul.mubr.bf16.gmra.mrb[0].mxu0 %v1286
  %v1372 = vpop.f32.mrb[0].mxu0
  %v1373 = vadd.f32 %v1325, %v1372
  %v1374 = vpop.f32.mrb[0].mxu0
  %v1375 = vpop.f32.mrb[0].mxu0
  %v1376 = vadd.f32 %v1328, %v1375
  %v1377 = vpop.f32.mrb[0].mxu0
  %1378 = vmatprep.mubr.bf16.mxu0 %v1289
  %1379 = vmatmul.mubr.bf16.gmra.mrb[0].mxu0 %v1288
  %v1380 = vpop.f32.mrb[0].mxu0
  %v1381 = vadd.f32 %v1333, %v1380
  %v1382 = vpop.f32.mrb[0].mxu0
  %v1383 = vpop.f32.mrb[0].mxu0
  %v1384 = vpop.f32.mrb[0].mxu0
  %1385 = vdwg.mxu0
  %v1386 = vmax.f32 %v1373, 0.0
  %v1387 = vmax.f32 %v1376, 0.0
  %v1388 = vmax.f32 %v1381, 0.0
  %v1389 = vpack.c.bf16 %v913, %v912
  %v1390 = vpack.c.bf16 %v914, %v913
  %v1391 = vpack.c.bf16 %v914, %v914
  %v1392 = vpack.c.bf16 %v915, %v915
  %1393 = vmatprep.subr.bf16.mxu0 0
  %1394 = vmatpush1.bf16.msra.mxu0 %v1123
  %1395 = vmatprep.subr.bf16.mxu0 0
  %1396 = vmatpush1.bf16.msra.mxu0 %v1124
  %1397 = vmatprep.subr.bf16.mxu0 0
  %1398 = vmatpush1.bf16.msra.mxu0 %v1125
  %1399 = vmatprep.subr.bf16.mxu0 0
  %1400 = vmatpush1.bf16.msra.mxu0 %v1126
  %1401 = vmatprep.subr.bf16.mxu0 0
  %1402 = vmatpush1.bf16.msra.mxu0 %v1127
  %1403 = vmatprep.subr.bf16.mxu0 0
  %1404 = vmatpush1.bf16.msra.mxu0 %v1128
  %1405 = vmatprep.subr.bf16.mxu0 0
  %1406 = vmatpush1.bf16.msra.mxu0 %v1129
  %1407 = vmatprep.subr.bf16.mxu0 0
  %1408 = vmatpush1.bf16.msra.mxu0 %v1130
  %1409 = vmatprep.subr.bf16.mxu0 0
  %1410 = vmatpush1.bf16.msra.mxu0 %v1131
  %1411 = vmatprep.subr.bf16.mxu0 0
  %1412 = vmatpush1.bf16.msra.mxu0 %v1132
  %1413 = vmatprep.subr.bf16.mxu0 0
  %1414 = vmatpush1.bf16.msra.mxu0 %v1133
  %1415 = vmatprep.subr.bf16.mxu0 0
  %1416 = vmatpush1.bf16.msra.mxu0 %v1134
  %1417 = vmatprep.subr.bf16.mxu0 0
  %1418 = vmatpush1.bf16.msra.mxu0 %v1135
  %1419 = vmatprep.subr.bf16.mxu0 0
  %1420 = vmatpush1.bf16.msra.mxu0 %v1136
  %1421 = vmatprep.subr.bf16.mxu0 0
  %1422 = vmatpush1.bf16.msra.mxu0 %v1137
  %1423 = vmatprep.subr.bf16.mxu0 0
  %1424 = vmatpush1.bf16.msra.mxu0 %v1138
  %1425 = vmatprep.mubr.bf16.mxu0 %v1287
  %1426 = vmatmul.mubr.bf16.gmra.mrb[0].mxu0 %v1286
  %v1427 = vpop.f32.mrb[0].mxu0
  %v1428 = vadd.f32 %v993, %v1427
  %v1429 = vpop.f32.mrb[0].mxu0
  %v1430 = vpop.f32.mrb[0].mxu0
  %v1431 = vadd.f32 %v993, %v1430
  %v1432 = vpop.f32.mrb[0].mxu0
  %1433 = vmatprep.mubr.bf16.mxu0 %v1289
  %1434 = vmatmul.mubr.bf16.gmra.mrb[0].mxu0 %v1288
  %v1435 = vpop.f32.mrb[0].mxu0
  %v1436 = vadd.f32 %v993, %v1435
  %v1437 = vpop.f32.mrb[0].mxu0
  %v1438 = vpop.f32.mrb[0].mxu0
  %v1439 = vpop.f32.mrb[0].mxu0
  %1440 = vdwg.mxu0
  %1441 = vmatprep.subr.bf16.mxu0 0
  %1442 = vmatpush1.bf16.msra.mxu0 %v1139
  %1443 = vmatprep.subr.bf16.mxu0 0
  %1444 = vmatpush1.bf16.msra.mxu0 %v1140
  %1445 = vmatprep.subr.bf16.mxu0 0
  %1446 = vmatpush1.bf16.msra.mxu0 %v1141
  %1447 = vmatprep.subr.bf16.mxu0 0
  %1448 = vmatpush1.bf16.msra.mxu0 %v1142
  %1449 = vmatprep.subr.bf16.mxu0 0
  %1450 = vmatpush1.bf16.msra.mxu0 %v1143
  %1451 = vmatprep.subr.bf16.mxu0 0
  %1452 = vmatpush1.bf16.msra.mxu0 %v1144
  %1453 = vmatprep.subr.bf16.mxu0 0
  %1454 = vmatpush1.bf16.msra.mxu0 %v1145
  %1455 = vmatprep.subr.bf16.mxu0 0
  %1456 = vmatpush1.bf16.msra.mxu0 %v1146
  %1457 = vmatprep.subr.bf16.mxu0 0
  %1458 = vmatpush1.bf16.msra.mxu0 %v1147
  %1459 = vmatprep.subr.bf16.mxu0 0
  %1460 = vmatpush1.bf16.msra.mxu0 %v1148
  %1461 = vmatprep.subr.bf16.mxu0 0
  %1462 = vmatpush1.bf16.msra.mxu0 %v1149
  %1463 = vmatprep.subr.bf16.mxu0 0
  %1464 = vmatpush1.bf16.msra.mxu0 %v1150
  %1465 = vmatprep.subr.bf16.mxu0 0
  %1466 = vmatpush1.bf16.msra.mxu0 %v1151
  %1467 = vmatprep.subr.bf16.mxu0 0
  %1468 = vmatpush1.bf16.msra.mxu0 %v1152
  %1469 = vmatprep.subr.bf16.mxu0 0
  %1470 = vmatpush1.bf16.msra.mxu0 %v1153
  %1471 = vmatprep.subr.bf16.mxu0 0
  %1472 = vmatpush1.bf16.msra.mxu0 %v1154
  %1473 = vmatprep.mubr.bf16.mxu0 %v1390
  %1474 = vmatmul.mubr.bf16.gmra.mrb[0].mxu0 %v1389
  %v1475 = vpop.f32.mrb[0].mxu0
  %v1476 = vadd.f32 %v1428, %v1475
  %v1477 = vpop.f32.mrb[0].mxu0
  %v1478 = vpop.f32.mrb[0].mxu0
  %v1479 = vadd.f32 %v1431, %v1478
  %v1480 = vpop.f32.mrb[0].mxu0
  %1481 = vmatprep.mubr.bf16.mxu0 %v1392
  %1482 = vmatmul.mubr.bf16.gmra.mrb[0].mxu0 %v1391
  %v1483 = vpop.f32.mrb[0].mxu0
  %v1484 = vadd.f32 %v1436, %v1483
  %v1485 = vpop.f32.mrb[0].mxu0
  %v1486 = vpop.f32.mrb[0].mxu0
  %v1487 = vpop.f32.mrb[0].mxu0
  %1488 = vdwg.mxu0
  %v1489 = vmax.f32 %v1476, 0.0
  %v1490 = vmax.f32 %v1479, 0.0
  %v1491 = vmax.f32 %v1484, 0.0
  %1493 = vrot.lane.b32.xlu0 %v1284, 64
  %v1494 = vpop.permute.xlu0 %1493
  %1497 = vrot.lane.b32.xlu0 %v1386, 64
  %v1498 = vpop.permute.xlu0 %1497
  %1501 = vrot.lane.b32.xlu0 %v1388, 64
  %v1502 = vpop.permute.xlu0 %1501
  %1505 = vrot.lane.b32.xlu0 %v1490, 64
  %v1506 = vpop.permute.xlu0 %1505
  %v1508 = vsel %vm584, %v1283, %v1494
  %v1509 = vsel %vm584, %v1285, %v1498
  %v1510 = vsel %vm584, %v1387, %v1502
  %v1511 = vsel %vm584, %v1489, %v1506
  %v1512 = vpack.c.bf16 %v1508, %v1508
  %v1513 = vpack.c.bf16 %v1509, %v1509
  %v1514 = vpack.c.bf16 %v1510, %v1510
  %v1515 = vpack.c.bf16 %v1511, %v1511
  %v1516 = vpack.c.bf16 %v1491, %v1491
  %v1517 = vld [vmem:[%s5] sm:$0xf]
  %v1518 = vld [vmem:[%s5 + $0x4] sm:$0xf]
  %v1519 = vld [vmem:[%s5 + $0x8] sm:$0xf]
  %v1520 = vld [vmem:[%s5 + $0xc] sm:$0xf]
  %v1521 = vld [vmem:[%s5 + $0x10] sm:$0xf]
  %v1522 = vld [vmem:[%s5 + $0x14] sm:$0xf]
  %v1523 = vld [vmem:[%s5 + $0x18] sm:$0xf]
  %v1524 = vld [vmem:[%s5 + $0x1c] sm:$0xf]
  %v1525 = vld [vmem:[%s5 + $0x20] sm:$0xf]
  %v1526 = vld [vmem:[%s5 + $0x24] sm:$0xf]
  %v1527 = vld [vmem:[%s5 + $0x28] sm:$0xf]
  %v1528 = vld [vmem:[%s5 + $0x2c] sm:$0xf]
  %v1529 = vld [vmem:[%s5 + $0x30] sm:$0xf]
  %v1530 = vld [vmem:[%s5 + $0x34] sm:$0xf]
  %v1531 = vld [vmem:[%s5 + $0x38] sm:$0xf]
  %v1532 = vld [vmem:[%s5 + $0x3c] sm:$0xf]
  %v1533 = vld [vmem:[%s5 + $0x40] sm:$0xf]
  %v1534 = vld [vmem:[%s5 + $0x44] sm:$0xf]
  %v1535 = vld [vmem:[%s5 + $0x48] sm:$0xf]
  %v1536 = vld [vmem:[%s5 + $0x4c] sm:$0xf]
  %v1537 = vld [vmem:[%s5 + $0x50] sm:$0xf]
  %v1538 = vld [vmem:[%s5 + $0x54] sm:$0xf]
  %v1539 = vld [vmem:[%s5 + $0x58] sm:$0xf]
  %v1540 = vld [vmem:[%s5 + $0x5c] sm:$0xf]
  %v1541 = vld [vmem:[%s5 + $0x60] sm:$0xf]
  %v1542 = vld [vmem:[%s5 + $0x64] sm:$0xf]
  %v1543 = vld [vmem:[%s5 + $0x68] sm:$0xf]
  %v1544 = vld [vmem:[%s5 + $0x6c] sm:$0xf]
  %v1545 = vld [vmem:[%s5 + $0x70] sm:$0xf]
  %v1546 = vld [vmem:[%s5 + $0x74] sm:$0xf]
  %v1547 = vld [vmem:[%s5 + $0x78] sm:$0xf]
  %v1548 = vld [vmem:[%s5 + $0x7c] sm:$0xf]
  %v1549 = vld [vmem:[%s5 + $0x80] sm:$0xf]
  %v1550 = vld [vmem:[%s5 + $0x84] sm:$0xf]
  %v1551 = vld [vmem:[%s5 + $0x88] sm:$0xf]
  %v1552 = vld [vmem:[%s5 + $0x8c] sm:$0xf]
  %v1553 = vld [vmem:[%s5 + $0x90] sm:$0xf]
  %v1554 = vld [vmem:[%s5 + $0x94] sm:$0xf]
  %v1555 = vld [vmem:[%s5 + $0x98] sm:$0xf]
  %v1556 = vld [vmem:[%s5 + $0x9c] sm:$0xf]
  %v1557 = vld [vmem:[%s5 + $0xa0] sm:$0xf]
  %v1558 = vld [vmem:[%s5 + $0xa4] sm:$0xf]
  %v1559 = vld [vmem:[%s5 + $0xa8] sm:$0xf]
  %v1560 = vld [vmem:[%s5 + $0xac] sm:$0xf]
  %v1561 = vld [vmem:[%s5 + $0xb0] sm:$0xf]
  %v1562 = vld [vmem:[%s5 + $0xb4] sm:$0xf]
  %v1563 = vld [vmem:[%s5 + $0xb8] sm:$0xf]
  %v1564 = vld [vmem:[%s5 + $0xbc] sm:$0xf]
  %v1565 = vld [vmem:[%s5 + $0xc0] sm:$0xf]
  %v1566 = vld [vmem:[%s5 + $0xc4] sm:$0xf]
  %v1567 = vld [vmem:[%s5 + $0xc8] sm:$0xf]
  %v1568 = vld [vmem:[%s5 + $0xcc] sm:$0xf]
  %v1569 = vld [vmem:[%s5 + $0xd0] sm:$0xf]
  %v1570 = vld [vmem:[%s5 + $0xd4] sm:$0xf]
  %v1571 = vld [vmem:[%s5 + $0xd8] sm:$0xf]
  %v1572 = vld [vmem:[%s5 + $0xdc] sm:$0xf]
  %v1573 = vld [vmem:[%s5 + $0xe0] sm:$0xf]
  %v1574 = vld [vmem:[%s5 + $0xe4] sm:$0xf]
  %v1575 = vld [vmem:[%s5 + $0xe8] sm:$0xf]
  %v1576 = vld [vmem:[%s5 + $0xec] sm:$0xf]
  %v1577 = vld [vmem:[%s5 + $0xf0] sm:$0xf]
  %v1578 = vld [vmem:[%s5 + $0xf4] sm:$0xf]
  %v1579 = vld [vmem:[%s5 + $0xf8] sm:$0xf]
  %v1580 = vld [vmem:[%s5 + $0xfc] sm:$0xf]
  %v1581 = vld [vmem:[%s5 + $0x100] sm:$0xf]
  %v1582 = vld [vmem:[%s5 + $0x104] sm:$0xf]
  %v1583 = vld [vmem:[%s5 + $0x108] sm:$0xf]
  %v1584 = vld [vmem:[%s5 + $0x10c] sm:$0xf]
  %v1585 = vld [vmem:[%s5 + $0x110] sm:$0xf]
  %v1586 = vld [vmem:[%s5 + $0x114] sm:$0xf]
  %v1587 = vld [vmem:[%s5 + $0x118] sm:$0xf]
  %v1588 = vld [vmem:[%s5 + $0x11c] sm:$0xf]
  %v1589 = vld [vmem:[%s6] sm:$0x1]
  %v1591 = vlaneseq
  %v1592 = vshrl.u32 %v1591, 7
  %v1593 = vsub.s32 0, %v1592
  %v1594 = vrot.slane %v1589, %v1593
  %v1668 = vunpack.c.l.b16 %v1517
  %v1669 = vunpack.c.l.b16 %v1518
  %v1670 = vunpack.c.l.b16 %v1519
  %v1671 = vunpack.c.l.b16 %v1520
  %v1672 = vunpack.c.l.b16 %v1521
  %v1673 = vunpack.c.l.b16 %v1522
  %v1674 = vunpack.c.l.b16 %v1523
  %v1675 = vunpack.c.l.b16 %v1524
  %v1676 = vunpack.c.l.b16 %v1525
  %v1677 = vunpack.c.l.b16 %v1526
  %v1678 = vunpack.c.l.b16 %v1527
  %v1679 = vunpack.c.l.b16 %v1528
  %v1680 = vunpack.c.l.b16 %v1529
  %v1681 = vunpack.c.l.b16 %v1530
  %v1682 = vunpack.c.l.b16 %v1531
  %v1683 = vunpack.c.l.b16 %v1532
  %v1684 = vunpack.c.l.b16 %v1533
  %v1685 = vunpack.c.l.b16 %v1534
  %v1686 = vunpack.c.l.b16 %v1535
  %v1687 = vunpack.c.l.b16 %v1536
  %v1688 = vunpack.c.l.b16 %v1537
  %v1689 = vunpack.c.l.b16 %v1538
  %v1690 = vunpack.c.l.b16 %v1539
  %v1691 = vunpack.c.l.b16 %v1540
  %v1692 = vunpack.c.l.b16 %v1541
  %v1693 = vunpack.c.l.b16 %v1542
  %v1694 = vunpack.c.l.b16 %v1543
  %v1695 = vunpack.c.l.b16 %v1544
  %v1696 = vunpack.c.l.b16 %v1545
  %v1697 = vunpack.c.l.b16 %v1546
  %v1698 = vunpack.c.l.b16 %v1547
  %v1699 = vunpack.c.l.b16 %v1548
  %v1700 = vunpack.c.l.b16 %v1549
  %v1701 = vunpack.c.l.b16 %v1550
  %v1702 = vunpack.c.l.b16 %v1551
  %v1703 = vunpack.c.l.b16 %v1552
  %v1704 = vunpack.c.l.b16 %v1553
  %v1705 = vunpack.c.l.b16 %v1554
  %v1706 = vunpack.c.l.b16 %v1555
  %v1707 = vunpack.c.l.b16 %v1556
  %v1708 = vunpack.c.l.b16 %v1557
  %v1709 = vunpack.c.l.b16 %v1558
  %v1710 = vunpack.c.l.b16 %v1559
  %v1711 = vunpack.c.l.b16 %v1560
  %v1712 = vunpack.c.l.b16 %v1561
  %v1713 = vunpack.c.l.b16 %v1562
  %v1714 = vunpack.c.l.b16 %v1563
  %v1715 = vunpack.c.l.b16 %v1564
  %v1716 = vunpack.c.l.b16 %v1565
  %v1717 = vunpack.c.l.b16 %v1566
  %v1718 = vunpack.c.l.b16 %v1567
  %v1719 = vunpack.c.l.b16 %v1568
  %v1720 = vunpack.c.l.b16 %v1569
  %v1721 = vunpack.c.l.b16 %v1570
  %v1722 = vunpack.c.l.b16 %v1571
  %v1723 = vunpack.c.l.b16 %v1572
  %v1724 = vunpack.c.l.b16 %v1573
  %v1725 = vunpack.c.l.b16 %v1574
  %v1726 = vunpack.c.l.b16 %v1575
  %v1727 = vunpack.c.l.b16 %v1576
  %v1728 = vunpack.c.l.b16 %v1577
  %v1729 = vunpack.c.l.b16 %v1578
  %v1730 = vunpack.c.l.b16 %v1579
  %v1731 = vunpack.c.l.b16 %v1580
  %v1732 = vunpack.c.l.b16 %v1581
  %v1733 = vunpack.c.l.b16 %v1582
  %v1734 = vunpack.c.l.b16 %v1583
  %v1735 = vunpack.c.l.b16 %v1584
  %v1736 = vunpack.c.l.b16 %v1585
  %v1737 = vunpack.c.l.b16 %v1586
  %v1738 = vunpack.c.l.b16 %v1587
  %v1739 = vunpack.c.l.b16 %v1588
  %v1740 = vpack.c.b16 %v1669, %v1668
  %v1741 = vpack.c.b16 %v1671, %v1670
  %v1742 = vpack.c.b16 %v1673, %v1672
  %v1743 = vpack.c.b16 %v1675, %v1674
  %v1744 = vpack.c.b16 %v1677, %v1676
  %v1745 = vpack.c.b16 %v1679, %v1678
  %v1746 = vpack.c.b16 %v1681, %v1680
  %v1747 = vpack.c.b16 %v1683, %v1682
  %v1748 = vpack.c.b16 %v1685, %v1684
  %v1749 = vpack.c.b16 %v1687, %v1686
  %v1750 = vpack.c.b16 %v1689, %v1688
  %v1751 = vpack.c.b16 %v1691, %v1690
  %v1752 = vpack.c.b16 %v1693, %v1692
  %v1753 = vpack.c.b16 %v1695, %v1694
  %v1754 = vpack.c.b16 %v1697, %v1696
  %v1755 = vpack.c.b16 %v1699, %v1698
  %v1756 = vpack.c.b16 %v1701, %v1700
  %v1757 = vpack.c.b16 %v1703, %v1702
  %v1758 = vpack.c.b16 %v1705, %v1704
  %v1759 = vpack.c.b16 %v1707, %v1706
  %v1760 = vpack.c.b16 %v1709, %v1708
  %v1761 = vpack.c.b16 %v1711, %v1710
  %v1762 = vpack.c.b16 %v1713, %v1712
  %v1763 = vpack.c.b16 %v1715, %v1714
  %v1764 = vpack.c.b16 %v1717, %v1716
  %v1765 = vpack.c.b16 %v1719, %v1718
  %v1766 = vpack.c.b16 %v1721, %v1720
  %v1767 = vpack.c.b16 %v1723, %v1722
  %v1768 = vpack.c.b16 %v1725, %v1724
  %v1769 = vpack.c.b16 %v1727, %v1726
  %v1770 = vpack.c.b16 %v1729, %v1728
  %v1771 = vpack.c.b16 %v1731, %v1730
  %v1772 = vpack.c.b16 %v1733, %v1732
  %v1773 = vpack.c.b16 %v1735, %v1734
  %v1774 = vpack.c.b16 %v1737, %v1736
  %v1775 = vpack.c.b16 %v1739, %v1738
  %v1813 = vsel %vm584, %v1516, 0
  %1815 = vmatprep.subr.bf16.mxu0 0
  %1816 = vmatpush1.bf16.msra.mxu0 %v1740
  %1817 = vmatprep.subr.bf16.mxu0 0
  %1818 = vmatpush1.bf16.msra.mxu0 %v1741
  %1819 = vmatprep.subr.bf16.mxu0 0
  %1820 = vmatpush1.bf16.msra.mxu0 %v1742
  %1821 = vmatprep.subr.bf16.mxu0 0
  %1822 = vmatpush1.bf16.msra.mxu0 %v1743
  %1823 = vmatprep.subr.bf16.mxu0 0
  %1824 = vmatpush1.bf16.msra.mxu0 %v1744
  %1825 = vmatprep.subr.bf16.mxu0 0
  %1826 = vmatpush1.bf16.msra.mxu0 %v1745
  %1827 = vmatprep.subr.bf16.mxu0 0
  %1828 = vmatpush1.bf16.msra.mxu0 %v1746
  %1829 = vmatprep.subr.bf16.mxu0 0
  %1830 = vmatpush1.bf16.msra.mxu0 %v1747
  %1831 = vmatprep.subr.bf16.mxu0 0
  %1832 = vmatpush1.bf16.msra.mxu0 %v1748
  %1833 = vmatprep.subr.bf16.mxu0 0
  %1834 = vmatpush1.bf16.msra.mxu0 %v1749
  %1835 = vmatprep.subr.bf16.mxu0 0
  %1836 = vmatpush1.bf16.msra.mxu0 %v1750
  %1837 = vmatprep.subr.bf16.mxu0 0
  %1838 = vmatpush1.bf16.msra.mxu0 %v1751
  %1839 = vmatprep.subr.bf16.mxu0 0
  %1840 = vmatpush1.bf16.msra.mxu0 %v1752
  %1841 = vmatprep.subr.bf16.mxu0 0
  %1842 = vmatpush1.bf16.msra.mxu0 %v1753
  %1843 = vmatprep.subr.bf16.mxu0 0
  %1844 = vmatpush1.bf16.msra.mxu0 %v1754
  %1845 = vmatprep.subr.bf16.mxu0 0
  %1846 = vmatpush1.bf16.msra.mxu0 %v1755
  %1847 = vmatprep.mubr.bf16.mxu0 %v1513
  %1848 = vmatmul.mubr.bf16.gmra.mrb[0].mxu0 %v1512
  %v1849 = vpop.f32.mrb[0].mxu0
  %v1850 = vadd.f32 %v1594, %v1849
  %v1851 = vpop.f32.mrb[0].mxu0
  %v1852 = vpop.f32.mrb[0].mxu0
  %v1853 = vpop.f32.mrb[0].mxu0
  %1854 = vdwg.mxu0
  %1855 = vmatprep.subr.bf16.mxu0 0
  %1856 = vmatpush1.bf16.msra.mxu0 %v1756
  %1857 = vmatprep.subr.bf16.mxu0 0
  %1858 = vmatpush1.bf16.msra.mxu0 %v1757
  %1859 = vmatprep.subr.bf16.mxu0 0
  %1860 = vmatpush1.bf16.msra.mxu0 %v1758
  %1861 = vmatprep.subr.bf16.mxu0 0
  %1862 = vmatpush1.bf16.msra.mxu0 %v1759
  %1863 = vmatprep.subr.bf16.mxu0 0
  %1864 = vmatpush1.bf16.msra.mxu0 %v1760
  %1865 = vmatprep.subr.bf16.mxu0 0
  %1866 = vmatpush1.bf16.msra.mxu0 %v1761
  %1867 = vmatprep.subr.bf16.mxu0 0
  %1868 = vmatpush1.bf16.msra.mxu0 %v1762
  %1869 = vmatprep.subr.bf16.mxu0 0
  %1870 = vmatpush1.bf16.msra.mxu0 %v1763
  %1871 = vmatprep.subr.bf16.mxu0 0
  %1872 = vmatpush1.bf16.msra.mxu0 %v1764
  %1873 = vmatprep.subr.bf16.mxu0 0
  %1874 = vmatpush1.bf16.msra.mxu0 %v1765
  %1875 = vmatprep.subr.bf16.mxu0 0
  %1876 = vmatpush1.bf16.msra.mxu0 %v1766
  %1877 = vmatprep.subr.bf16.mxu0 0
  %1878 = vmatpush1.bf16.msra.mxu0 %v1767
  %1879 = vmatprep.subr.bf16.mxu0 0
  %1880 = vmatpush1.bf16.msra.mxu0 %v1768
  %1881 = vmatprep.subr.bf16.mxu0 0
  %1882 = vmatpush1.bf16.msra.mxu0 %v1769
  %1883 = vmatprep.subr.bf16.mxu0 0
  %1884 = vmatpush1.bf16.msra.mxu0 %v1770
  %1885 = vmatprep.subr.bf16.mxu0 0
  %1886 = vmatpush1.bf16.msra.mxu0 %v1771
  %1887 = vmatprep.mubr.bf16.mxu0 %v1515
  %1888 = vmatmul.mubr.bf16.gmra.mrb[0].mxu0 %v1514
  %v1889 = vpop.f32.mrb[0].mxu0
  %v1890 = vadd.f32 %v1850, %v1889
  %v1891 = vpop.f32.mrb[0].mxu0
  %v1892 = vpop.f32.mrb[0].mxu0
  %v1893 = vpop.f32.mrb[0].mxu0
  %1894 = vdwg.mxu0
  %1895 = vmatprep.subr.bf16.mxu0 0
  %1896 = vmatpush1.bf16.msra.mxu0 %v1772
  %1897 = vmatprep.subr.bf16.mxu0 0
  %1898 = vmatpush1.bf16.msra.mxu0 %v1773
  %1899 = vmatprep.subr.bf16.mxu0 0
  %1900 = vmatpush1.bf16.msra.mxu0 %v1774
  %1901 = vmatprep.subr.bf16.mxu0 0
  %1902 = vmatpush1.bf16.msra.mxu0 %v1775
  %1903 = vmatprep.subr.bf16.mxu0 0
  %1904 = vmatpush1.bf16.msra.mxu0 0
  %1905 = vmatprep.subr.bf16.mxu0 0
  %1906 = vmatpush1.bf16.msra.mxu0 0
  %1907 = vmatprep.subr.bf16.mxu0 0
  %1908 = vmatpush1.bf16.msra.mxu0 0
  %1909 = vmatprep.subr.bf16.mxu0 0
  %1910 = vmatpush1.bf16.msra.mxu0 0
  %1911 = vmatprep.subr.bf16.mxu0 0
  %1912 = vmatpush1.bf16.msra.mxu0 0
  %1913 = vmatprep.subr.bf16.mxu0 0
  %1914 = vmatpush1.bf16.msra.mxu0 0
  %1915 = vmatprep.subr.bf16.mxu0 0
  %1916 = vmatpush1.bf16.msra.mxu0 0
  %1917 = vmatprep.subr.bf16.mxu0 0
  %1918 = vmatpush1.bf16.msra.mxu0 0
  %1919 = vmatprep.subr.bf16.mxu0 0
  %1920 = vmatpush1.bf16.msra.mxu0 0
  %1921 = vmatprep.subr.bf16.mxu0 0
  %1922 = vmatpush1.bf16.msra.mxu0 0
  %1923 = vmatprep.subr.bf16.mxu0 0
  %1924 = vmatpush1.bf16.msra.mxu0 0
  %1925 = vmatprep.subr.bf16.mxu0 0
  %1926 = vmatpush1.bf16.msra.mxu0 0
  %1927 = vmatprep.mubr.bf16.mxu0 0
  %1928 = vmatmul.mubr.bf16.gmra.mrb[0].mxu0 %v1813
  %v1929 = vpop.f32.mrb[0].mxu0
  %v1930 = vadd.f32 %v1890, %v1929
  %v1931 = vpop.f32.mrb[0].mxu0
  %v1932 = vpop.f32.mrb[0].mxu0
  %v1933 = vpop.f32.mrb[0].mxu0
  %1934 = vdwg.mxu0
  %v1935 = vmax.f32 %v1930, 0.0
  %v1936 = vpack.c.bf16 %v1935, %v1935
  %v1937 = vld [vmem:[%s7] sm:$0xff]
  %v1938 = vld [vmem:[%s7 + $0x8] sm:$0xff]
  %v1939 = vld [vmem:[%s7 + $0x10] sm:$0xff]
  %v1940 = vld [vmem:[%s7 + $0x18] sm:$0xff]
  %v1941 = vld [vmem:[%s7 + $0x20] sm:$0xff]
  %v1942 = vld [vmem:[%s7 + $0x28] sm:$0xff]
  %v1943 = vld [vmem:[%s7 + $0x30] sm:$0xff]
  %v1944 = vld [vmem:[%s7 + $0x38] sm:$0xff]
  %v1945 = vld [vmem:[%s7 + $0x40] sm:$0xff]
  %v1946 = vld [vmem:[%s7 + $0x48] sm:$0xff]
  %v1947 = vld [vmem:[%s7 + $0x50] sm:$0xff]
  %v1948 = vld [vmem:[%s7 + $0x58] sm:$0xff]
  %v1949 = vld [vmem:[%s7 + $0x60] sm:$0xff]
  %v1950 = vld [vmem:[%s7 + $0x68] sm:$0xff]
  %v1951 = vld [vmem:[%s7 + $0x70] sm:$0xff]
  %v1952 = vld [vmem:[%s7 + $0x78] sm:$0xff]
  %v1953 = vld [vmem:[%s8] sm:$0xf]
  %v1955 = vlaneseq
  %v1956 = vshrl.u32 %v1955, 7
  %v1957 = vsub.s32 0, %v1956
  %v1958 = vrot.slane %v1953, %v1957
  %v1959 = vlaneseq
  %v1960 = vshrl.u32 %v1959, 7
  %v1961 = vsub.s32 1, %v1960
  %v1962 = vrot.slane %v1953, %v1961
  %v1963 = vlaneseq
  %v1964 = vshrl.u32 %v1963, 7
  %v1965 = vsub.s32 2, %v1964
  %v1966 = vrot.slane %v1953, %v1965
  %v1967 = vlaneseq
  %v1968 = vshrl.u32 %v1967, 7
  %v1969 = vsub.s32 3, %v1968
  %v1970 = vrot.slane %v1953, %v1969
  %v1991 = vunpack.c.l.b16 %v1937
  %v1992 = vunpack.c.h.b16 %v1937
  %v1993 = vunpack.c.l.b16 %v1938
  %v1994 = vunpack.c.h.b16 %v1938
  %v1995 = vunpack.c.l.b16 %v1939
  %v1996 = vunpack.c.h.b16 %v1939
  %v1997 = vunpack.c.l.b16 %v1940
  %v1998 = vunpack.c.h.b16 %v1940
  %v1999 = vunpack.c.l.b16 %v1941
  %v2000 = vunpack.c.h.b16 %v1941
  %v2001 = vunpack.c.l.b16 %v1942
  %v2002 = vunpack.c.h.b16 %v1942
  %v2003 = vunpack.c.l.b16 %v1943
  %v2004 = vunpack.c.h.b16 %v1943
  %v2005 = vunpack.c.l.b16 %v1944
  %v2006 = vunpack.c.h.b16 %v1944
  %v2007 = vunpack.c.l.b16 %v1945
  %v2008 = vunpack.c.h.b16 %v1945
  %v2009 = vunpack.c.l.b16 %v1946
  %v2010 = vunpack.c.h.b16 %v1946
  %v2011 = vunpack.c.l.b16 %v1947
  %v2012 = vunpack.c.h.b16 %v1947
  %v2013 = vunpack.c.l.b16 %v1948
  %v2014 = vunpack.c.h.b16 %v1948
  %v2015 = vunpack.c.l.b16 %v1949
  %v2016 = vunpack.c.h.b16 %v1949
  %v2017 = vunpack.c.l.b16 %v1950
  %v2018 = vunpack.c.h.b16 %v1950
  %v2019 = vunpack.c.l.b16 %v1951
  %v2020 = vunpack.c.h.b16 %v1951
  %v2021 = vunpack.c.l.b16 %v1952
  %v2022 = vunpack.c.h.b16 %v1952
  %v2023 = vpack.c.b16 %v1995, %v1991
  %v2024 = vpack.c.b16 %v1996, %v1992
  %v2025 = vpack.c.b16 %v1997, %v1993
  %v2026 = vpack.c.b16 %v1998, %v1994
  %v2027 = vpack.c.b16 %v2003, %v1999
  %v2028 = vpack.c.b16 %v2004, %v2000
  %v2029 = vpack.c.b16 %v2005, %v2001
  %v2030 = vpack.c.b16 %v2006, %v2002
  %v2031 = vpack.c.b16 %v2011, %v2007
  %v2032 = vpack.c.b16 %v2012, %v2008
  %v2033 = vpack.c.b16 %v2013, %v2009
  %v2034 = vpack.c.b16 %v2014, %v2010
  %v2035 = vpack.c.b16 %v2019, %v2015
  %v2036 = vpack.c.b16 %v2020, %v2016
  %v2037 = vpack.c.b16 %v2021, %v2017
  %v2038 = vpack.c.b16 %v2022, %v2018
  %v2056 = vsel %vm584, %v1936, 0
  %2058 = vmatprep.subr.bf16.mxu0 %v2024
  %2059 = vmatpush1.bf16.msra.mxu0 %v2023
  %2060 = vmatprep.subr.bf16.mxu0 %v2028
  %2061 = vmatpush1.bf16.msra.mxu0 %v2027
  %2062 = vmatprep.subr.bf16.mxu0 %v2032
  %2063 = vmatpush1.bf16.msra.mxu0 %v2031
  %2064 = vmatprep.subr.bf16.mxu0 %v2036
  %2065 = vmatpush1.bf16.msra.mxu0 %v2035
  %2066 = vmatprep.subr.bf16.mxu0 0
  %2067 = vmatpush1.bf16.msra.mxu0 0
  %2068 = vmatprep.subr.bf16.mxu0 0
  %2069 = vmatpush1.bf16.msra.mxu0 0
  %2070 = vmatprep.subr.bf16.mxu0 0
  %2071 = vmatpush1.bf16.msra.mxu0 0
  %2072 = vmatprep.subr.bf16.mxu0 0
  %2073 = vmatpush1.bf16.msra.mxu0 0
  %2074 = vmatprep.subr.bf16.mxu0 0
  %2075 = vmatpush1.bf16.msra.mxu0 0
  %2076 = vmatprep.subr.bf16.mxu0 0
  %2077 = vmatpush1.bf16.msra.mxu0 0
  %2078 = vmatprep.subr.bf16.mxu0 0
  %2079 = vmatpush1.bf16.msra.mxu0 0
  %2080 = vmatprep.subr.bf16.mxu0 0
  %2081 = vmatpush1.bf16.msra.mxu0 0
  %2082 = vmatprep.subr.bf16.mxu0 0
  %2083 = vmatpush1.bf16.msra.mxu0 0
  %2084 = vmatprep.subr.bf16.mxu0 0
  %2085 = vmatpush1.bf16.msra.mxu0 0
  %2086 = vmatprep.subr.bf16.mxu0 0
  %2087 = vmatpush1.bf16.msra.mxu0 0
  %2088 = vmatprep.subr.bf16.mxu0 0
  %2089 = vmatpush1.bf16.msra.mxu0 0
  %2090 = vmatprep.mubr.bf16.mxu0 0
  %2091 = vmatmul.mubr.bf16.gmra.mrb[0].mxu0 %v2056
  %v2092 = vpop.f32.mrb[0].mxu0
  %v2093 = vadd.f32 %v1958, %v2092
  %v2094 = vpop.f32.mrb[0].mxu0
  %v2095 = vadd.f32 %v1962, %v2094
  %v2096 = vpop.f32.mrb[0].mxu0
  %v2097 = vpop.f32.mrb[0].mxu0
  %2098 = vdwg.mxu0
  %2099 = vmatprep.subr.bf16.mxu0 %v2026
  %2100 = vmatpush1.bf16.msra.mxu0 %v2025
  %2101 = vmatprep.subr.bf16.mxu0 %v2030
  %2102 = vmatpush1.bf16.msra.mxu0 %v2029
  %2103 = vmatprep.subr.bf16.mxu0 %v2034
  %2104 = vmatpush1.bf16.msra.mxu0 %v2033
  %2105 = vmatprep.subr.bf16.mxu0 %v2038
  %2106 = vmatpush1.bf16.msra.mxu0 %v2037
  %2107 = vmatprep.subr.bf16.mxu0 0
  %2108 = vmatpush1.bf16.msra.mxu0 0
  %2109 = vmatprep.subr.bf16.mxu0 0
  %2110 = vmatpush1.bf16.msra.mxu0 0
  %2111 = vmatprep.subr.bf16.mxu0 0
  %2112 = vmatpush1.bf16.msra.mxu0 0
  %2113 = vmatprep.subr.bf16.mxu0 0
  %2114 = vmatpush1.bf16.msra.mxu0 0
  %2115 = vmatprep.subr.bf16.mxu0 0
  %2116 = vmatpush1.bf16.msra.mxu0 0
  %2117 = vmatprep.subr.bf16.mxu0 0
  %2118 = vmatpush1.bf16.msra.mxu0 0
  %2119 = vmatprep.subr.bf16.mxu0 0
  %2120 = vmatpush1.bf16.msra.mxu0 0
  %2121 = vmatprep.subr.bf16.mxu0 0
  %2122 = vmatpush1.bf16.msra.mxu0 0
  %2123 = vmatprep.subr.bf16.mxu0 0
  %2124 = vmatpush1.bf16.msra.mxu0 0
  %2125 = vmatprep.subr.bf16.mxu0 0
  %2126 = vmatpush1.bf16.msra.mxu0 0
  %2127 = vmatprep.subr.bf16.mxu0 0
  %2128 = vmatpush1.bf16.msra.mxu0 0
  %2129 = vmatprep.subr.bf16.mxu0 0
  %2130 = vmatpush1.bf16.msra.mxu0 0
  %2131 = vmatprep.mubr.bf16.mxu0 0
  %2132 = vmatmul.mubr.bf16.gmra.mrb[0].mxu0 %v2056
  %v2133 = vpop.f32.mrb[0].mxu0
  %v2134 = vadd.f32 %v1966, %v2133
  %v2135 = vpop.f32.mrb[0].mxu0
  %v2136 = vadd.f32 %v1970, %v2135
  %v2137 = vpop.f32.mrb[0].mxu0
  %v2138 = vpop.f32.mrb[0].mxu0
  %2139 = vdwg.mxu0
  %v2140 = vmax.f32 %v2093, 0.0
  %v2141 = vmax.f32 %v2095, 0.0
  %v2142 = vmax.f32 %v2134, 0.0
  %v2143 = vmax.f32 %v2136, 0.0
  %v2144 = vpack.c.bf16 %v2140, %v2140
  %v2145 = vpack.c.bf16 %v2141, %v2141
  %v2146 = vpack.c.bf16 %v2142, %v2142
  %v2147 = vpack.c.bf16 %v2143, %v2143
  %v2148 = vld [vmem:[%s9] sm:$0xf]
  %v2149 = vld [vmem:[%s9 + $0x4] sm:$0xf]
  %v2150 = vld [vmem:[%s9 + $0x8] sm:$0xf]
  %v2151 = vld [vmem:[%s9 + $0xc] sm:$0xf]
  %v2152 = vld [vmem:[%s9 + $0x10] sm:$0xf]
  %v2153 = vld [vmem:[%s9 + $0x14] sm:$0xf]
  %v2154 = vld [vmem:[%s9 + $0x18] sm:$0xf]
  %v2155 = vld [vmem:[%s9 + $0x1c] sm:$0xf]
  %v2156 = vld [vmem:[%s9 + $0x20] sm:$0xf]
  %v2157 = vld [vmem:[%s9 + $0x24] sm:$0xf]
  %v2158 = vld [vmem:[%s9 + $0x28] sm:$0xf]
  %v2159 = vld [vmem:[%s9 + $0x2c] sm:$0xf]
  %v2160 = vld [vmem:[%s9 + $0x30] sm:$0xf]
  %v2161 = vld [vmem:[%s9 + $0x34] sm:$0xf]
  %v2162 = vld [vmem:[%s9 + $0x38] sm:$0xf]
  %v2163 = vld [vmem:[%s9 + $0x3c] sm:$0xf]
  %v2164 = vld [vmem:[%s9 + $0x40] sm:$0xf]
  %v2165 = vld [vmem:[%s9 + $0x44] sm:$0xf]
  %v2166 = vld [vmem:[%s9 + $0x48] sm:$0xf]
  %v2167 = vld [vmem:[%s9 + $0x4c] sm:$0xf]
  %v2168 = vld [vmem:[%s9 + $0x50] sm:$0xf]
  %v2169 = vld [vmem:[%s9 + $0x54] sm:$0xf]
  %v2170 = vld [vmem:[%s9 + $0x58] sm:$0xf]
  %v2171 = vld [vmem:[%s9 + $0x5c] sm:$0xf]
  %v2172 = vld [vmem:[%s9 + $0x60] sm:$0xf]
  %v2173 = vld [vmem:[%s9 + $0x64] sm:$0xf]
  %v2174 = vld [vmem:[%s9 + $0x68] sm:$0xf]
  %v2175 = vld [vmem:[%s9 + $0x6c] sm:$0xf]
  %v2176 = vld [vmem:[%s9 + $0x70] sm:$0xf]
  %v2177 = vld [vmem:[%s9 + $0x74] sm:$0xf]
  %v2178 = vld [vmem:[%s9 + $0x78] sm:$0xf]
  %v2179 = vld [vmem:[%s9 + $0x7c] sm:$0xf]
  %v2180 = vld [vmem:[%s9 + $0x80] sm:$0xf]
  %v2181 = vld [vmem:[%s9 + $0x84] sm:$0xf]
  %v2182 = vld [vmem:[%s9 + $0x88] sm:$0xf]
  %v2183 = vld [vmem:[%s9 + $0x8c] sm:$0xf]
  %v2184 = vld [vmem:[%s9 + $0x90] sm:$0xf]
  %v2185 = vld [vmem:[%s9 + $0x94] sm:$0xf]
  %v2186 = vld [vmem:[%s9 + $0x98] sm:$0xf]
  %v2187 = vld [vmem:[%s9 + $0x9c] sm:$0xf]
  %v2188 = vld [vmem:[%s9 + $0xa0] sm:$0xf]
  %v2189 = vld [vmem:[%s9 + $0xa4] sm:$0xf]
  %v2190 = vld [vmem:[%s9 + $0xa8] sm:$0xf]
  %v2191 = vld [vmem:[%s9 + $0xac] sm:$0xf]
  %v2192 = vld [vmem:[%s9 + $0xb0] sm:$0xf]
  %v2193 = vld [vmem:[%s9 + $0xb4] sm:$0xf]
  %v2194 = vld [vmem:[%s9 + $0xb8] sm:$0xf]
  %v2195 = vld [vmem:[%s9 + $0xbc] sm:$0xf]
  %v2196 = vld [vmem:[%s9 + $0xc0] sm:$0xf]
  %v2197 = vld [vmem:[%s9 + $0xc4] sm:$0xf]
  %v2198 = vld [vmem:[%s9 + $0xc8] sm:$0xf]
  %v2199 = vld [vmem:[%s9 + $0xcc] sm:$0xf]
  %v2200 = vld [vmem:[%s9 + $0xd0] sm:$0xf]
  %v2201 = vld [vmem:[%s9 + $0xd4] sm:$0xf]
  %v2202 = vld [vmem:[%s9 + $0xd8] sm:$0xf]
  %v2203 = vld [vmem:[%s9 + $0xdc] sm:$0xf]
  %v2204 = vld [vmem:[%s9 + $0xe0] sm:$0xf]
  %v2205 = vld [vmem:[%s9 + $0xe4] sm:$0xf]
  %v2206 = vld [vmem:[%s9 + $0xe8] sm:$0xf]
  %v2207 = vld [vmem:[%s9 + $0xec] sm:$0xf]
  %v2208 = vld [vmem:[%s9 + $0xf0] sm:$0xf]
  %v2209 = vld [vmem:[%s9 + $0xf4] sm:$0xf]
  %v2210 = vld [vmem:[%s9 + $0xf8] sm:$0xf]
  %v2211 = vld [vmem:[%s9 + $0xfc] sm:$0xf]
  %v2212 = vld [vmem:[%s10] sm:$0x1]
  %v2214 = vlaneseq
  %v2215 = vshrl.u32 %v2214, 7
  %v2216 = vsub.s32 0, %v2215
  %v2217 = vrot.slane %v2212, %v2216
  %v2283 = vunpack.c.l.b16 %v2148
  %v2284 = vunpack.c.l.b16 %v2149
  %v2285 = vunpack.c.l.b16 %v2150
  %v2286 = vunpack.c.l.b16 %v2151
  %v2287 = vunpack.c.l.b16 %v2152
  %v2288 = vunpack.c.l.b16 %v2153
  %v2289 = vunpack.c.l.b16 %v2154
  %v2290 = vunpack.c.l.b16 %v2155
  %v2291 = vunpack.c.l.b16 %v2156
  %v2292 = vunpack.c.l.b16 %v2157
  %v2293 = vunpack.c.l.b16 %v2158
  %v2294 = vunpack.c.l.b16 %v2159
  %v2295 = vunpack.c.l.b16 %v2160
  %v2296 = vunpack.c.l.b16 %v2161
  %v2297 = vunpack.c.l.b16 %v2162
  %v2298 = vunpack.c.l.b16 %v2163
  %v2299 = vunpack.c.l.b16 %v2164
  %v2300 = vunpack.c.l.b16 %v2165
  %v2301 = vunpack.c.l.b16 %v2166
  %v2302 = vunpack.c.l.b16 %v2167
  %v2303 = vunpack.c.l.b16 %v2168
  %v2304 = vunpack.c.l.b16 %v2169
  %v2305 = vunpack.c.l.b16 %v2170
  %v2306 = vunpack.c.l.b16 %v2171
  %v2307 = vunpack.c.l.b16 %v2172
  %v2308 = vunpack.c.l.b16 %v2173
  %v2309 = vunpack.c.l.b16 %v2174
  %v2310 = vunpack.c.l.b16 %v2175
  %v2311 = vunpack.c.l.b16 %v2176
  %v2312 = vunpack.c.l.b16 %v2177
  %v2313 = vunpack.c.l.b16 %v2178
  %v2314 = vunpack.c.l.b16 %v2179
  %v2315 = vunpack.c.l.b16 %v2180
  %v2316 = vunpack.c.l.b16 %v2181
  %v2317 = vunpack.c.l.b16 %v2182
  %v2318 = vunpack.c.l.b16 %v2183
  %v2319 = vunpack.c.l.b16 %v2184
  %v2320 = vunpack.c.l.b16 %v2185
  %v2321 = vunpack.c.l.b16 %v2186
  %v2322 = vunpack.c.l.b16 %v2187
  %v2323 = vunpack.c.l.b16 %v2188
  %v2324 = vunpack.c.l.b16 %v2189
  %v2325 = vunpack.c.l.b16 %v2190
  %v2326 = vunpack.c.l.b16 %v2191
  %v2327 = vunpack.c.l.b16 %v2192
  %v2328 = vunpack.c.l.b16 %v2193
  %v2329 = vunpack.c.l.b16 %v2194
  %v2330 = vunpack.c.l.b16 %v2195
  %v2331 = vunpack.c.l.b16 %v2196
  %v2332 = vunpack.c.l.b16 %v2197
  %v2333 = vunpack.c.l.b16 %v2198
  %v2334 = vunpack.c.l.b16 %v2199
  %v2335 = vunpack.c.l.b16 %v2200
  %v2336 = vunpack.c.l.b16 %v2201
  %v2337 = vunpack.c.l.b16 %v2202
  %v2338 = vunpack.c.l.b16 %v2203
  %v2339 = vunpack.c.l.b16 %v2204
  %v2340 = vunpack.c.l.b16 %v2205
  %v2341 = vunpack.c.l.b16 %v2206
  %v2342 = vunpack.c.l.b16 %v2207
  %v2343 = vunpack.c.l.b16 %v2208
  %v2344 = vunpack.c.l.b16 %v2209
  %v2345 = vunpack.c.l.b16 %v2210
  %v2346 = vunpack.c.l.b16 %v2211
  %v2347 = vpack.c.b16 %v2284, %v2283
  %v2348 = vpack.c.b16 %v2286, %v2285
  %v2349 = vpack.c.b16 %v2288, %v2287
  %v2350 = vpack.c.b16 %v2290, %v2289
  %v2351 = vpack.c.b16 %v2292, %v2291
  %v2352 = vpack.c.b16 %v2294, %v2293
  %v2353 = vpack.c.b16 %v2296, %v2295
  %v2354 = vpack.c.b16 %v2298, %v2297
  %v2355 = vpack.c.b16 %v2300, %v2299
  %v2356 = vpack.c.b16 %v2302, %v2301
  %v2357 = vpack.c.b16 %v2304, %v2303
  %v2358 = vpack.c.b16 %v2306, %v2305
  %v2359 = vpack.c.b16 %v2308, %v2307
  %v2360 = vpack.c.b16 %v2310, %v2309
  %v2361 = vpack.c.b16 %v2312, %v2311
  %v2362 = vpack.c.b16 %v2314, %v2313
  %v2363 = vpack.c.b16 %v2316, %v2315
  %v2364 = vpack.c.b16 %v2318, %v2317
  %v2365 = vpack.c.b16 %v2320, %v2319
  %v2366 = vpack.c.b16 %v2322, %v2321
  %v2367 = vpack.c.b16 %v2324, %v2323
  %v2368 = vpack.c.b16 %v2326, %v2325
  %v2369 = vpack.c.b16 %v2328, %v2327
  %v2370 = vpack.c.b16 %v2330, %v2329
  %v2371 = vpack.c.b16 %v2332, %v2331
  %v2372 = vpack.c.b16 %v2334, %v2333
  %v2373 = vpack.c.b16 %v2336, %v2335
  %v2374 = vpack.c.b16 %v2338, %v2337
  %v2375 = vpack.c.b16 %v2340, %v2339
  %v2376 = vpack.c.b16 %v2342, %v2341
  %v2377 = vpack.c.b16 %v2344, %v2343
  %v2378 = vpack.c.b16 %v2346, %v2345
  %2411 = vmatprep.subr.bf16.mxu0 0
  %2412 = vmatpush1.bf16.msra.mxu0 %v2347
  %2413 = vmatprep.subr.bf16.mxu0 0
  %2414 = vmatpush1.bf16.msra.mxu0 %v2348
  %2415 = vmatprep.subr.bf16.mxu0 0
  %2416 = vmatpush1.bf16.msra.mxu0 %v2349
  %2417 = vmatprep.subr.bf16.mxu0 0
  %2418 = vmatpush1.bf16.msra.mxu0 %v2350
  %2419 = vmatprep.subr.bf16.mxu0 0
  %2420 = vmatpush1.bf16.msra.mxu0 %v2351
  %2421 = vmatprep.subr.bf16.mxu0 0
  %2422 = vmatpush1.bf16.msra.mxu0 %v2352
  %2423 = vmatprep.subr.bf16.mxu0 0
  %2424 = vmatpush1.bf16.msra.mxu0 %v2353
  %2425 = vmatprep.subr.bf16.mxu0 0
  %2426 = vmatpush1.bf16.msra.mxu0 %v2354
  %2427 = vmatprep.subr.bf16.mxu0 0
  %2428 = vmatpush1.bf16.msra.mxu0 %v2355
  %2429 = vmatprep.subr.bf16.mxu0 0
  %2430 = vmatpush1.bf16.msra.mxu0 %v2356
  %2431 = vmatprep.subr.bf16.mxu0 0
  %2432 = vmatpush1.bf16.msra.mxu0 %v2357
  %2433 = vmatprep.subr.bf16.mxu0 0
  %2434 = vmatpush1.bf16.msra.mxu0 %v2358
  %2435 = vmatprep.subr.bf16.mxu0 0
  %2436 = vmatpush1.bf16.msra.mxu0 %v2359
  %2437 = vmatprep.subr.bf16.mxu0 0
  %2438 = vmatpush1.bf16.msra.mxu0 %v2360
  %2439 = vmatprep.subr.bf16.mxu0 0
  %2440 = vmatpush1.bf16.msra.mxu0 %v2361
  %2441 = vmatprep.subr.bf16.mxu0 0
  %2442 = vmatpush1.bf16.msra.mxu0 %v2362
  %2443 = vmatprep.mubr.bf16.mxu0 %v2145
  %2444 = vmatmul.mubr.bf16.gmra.mrb[0].mxu0 %v2144
  %v2445 = vpop.f32.mrb[0].mxu0
  %v2446 = vadd.f32 %v2217, %v2445
  %v2447 = vpop.f32.mrb[0].mxu0
  %v2448 = vpop.f32.mrb[0].mxu0
  %v2449 = vpop.f32.mrb[0].mxu0
  %2450 = vdwg.mxu0
  %2451 = vmatprep.subr.bf16.mxu0 0
  %2452 = vmatpush1.bf16.msra.mxu0 %v2363
  %2453 = vmatprep.subr.bf16.mxu0 0
  %2454 = vmatpush1.bf16.msra.mxu0 %v2364
  %2455 = vmatprep.subr.bf16.mxu0 0
  %2456 = vmatpush1.bf16.msra.mxu0 %v2365
  %2457 = vmatprep.subr.bf16.mxu0 0
  %2458 = vmatpush1.bf16.msra.mxu0 %v2366
  %2459 = vmatprep.subr.bf16.mxu0 0
  %2460 = vmatpush1.bf16.msra.mxu0 %v2367
  %2461 = vmatprep.subr.bf16.mxu0 0
  %2462 = vmatpush1.bf16.msra.mxu0 %v2368
  %2463 = vmatprep.subr.bf16.mxu0 0
  %2464 = vmatpush1.bf16.msra.mxu0 %v2369
  %2465 = vmatprep.subr.bf16.mxu0 0
  %2466 = vmatpush1.bf16.msra.mxu0 %v2370
  %2467 = vmatprep.subr.bf16.mxu0 0
  %2468 = vmatpush1.bf16.msra.mxu0 %v2371
  %2469 = vmatprep.subr.bf16.mxu0 0
  %2470 = vmatpush1.bf16.msra.mxu0 %v2372
  %2471 = vmatprep.subr.bf16.mxu0 0
  %2472 = vmatpush1.bf16.msra.mxu0 %v2373
  %2473 = vmatprep.subr.bf16.mxu0 0
  %2474 = vmatpush1.bf16.msra.mxu0 %v2374
  %2475 = vmatprep.subr.bf16.mxu0 0
  %2476 = vmatpush1.bf16.msra.mxu0 %v2375
  %2477 = vmatprep.subr.bf16.mxu0 0
  %2478 = vmatpush1.bf16.msra.mxu0 %v2376
  %2479 = vmatprep.subr.bf16.mxu0 0
  %2480 = vmatpush1.bf16.msra.mxu0 %v2377
  %2481 = vmatprep.subr.bf16.mxu0 0
  %2482 = vmatpush1.bf16.msra.mxu0 %v2378
  %2483 = vmatprep.mubr.bf16.mxu0 %v2147
  %2484 = vmatmul.mubr.bf16.gmra.mrb[0].mxu0 %v2146
  %v2485 = vpop.f32.mrb[0].mxu0
  %v2486 = vadd.f32 %v2446, %v2485
  %v2487 = vpop.f32.mrb[0].mxu0
  %v2488 = vpop.f32.mrb[0].mxu0
  %v2489 = vpop.f32.mrb[0].mxu0
  %2490 = vdwg.mxu0
  %2491 = vmax.xlane.f32.xlu0 %v2486
  %v2492 = vpop.xlane.xlu0 %2491
  %v2493 = vsub.f32 %v2486, %v2492
  %v2494 = vmul.f32 %v2493, 1.442695
  %v2495 = vpow.pop %v2494
  %2496 = vadd.xlane.f32.xlu0 %v2495
  %v2497 = vpop.xlane.xlu0 %2496
  %v2498 = vlog2.pop %v2497
  %v2499 = vmul.f32 %v2498, 0.6931472
  %v2500 = vsub.f32 %v2493, %v2499
  %2501 = vst [vmem:[%s11] sm:$0xff] %v2500
  %v2502 = vrcp.pop %v2497
  %v2503 = vmul.f32 %v2495, %v2502
  %2504 = vst [vmem:[%s12] sm:$0xff] %v2503
  // Predicated region
  $region46: #{actor_forward.1} parent=0 // pred_check
    _
  $region47: #{actor_forward.1} parent=0 // pred_check_branch
    %2506 = sbr.rel (0) target = $region49
  $region48: #{actor_forward.1} parent=0 // pred_region
    _
  $region49: #{actor_forward.1} parent=0 // pred_fallthru
    _
  // Predicated region
  $region50: #{actor_forward.1} parent=0 // pred_check
    _
  $region51: #{actor_forward.1} parent=0 // pred_check_branch
    %2508 = sbr.rel (0) target = $region53
  $region52: #{actor_forward.1} parent=0 // pred_region
    _
  $region53: #{actor_forward.1} parent=0 // pred_fallthru
    _
  // Predicated region
  $region54: #{actor_forward.1} parent=0 // pred_check
    _
  $region55: #{actor_forward.1} parent=0 // pred_check_branch
    %2510 = sbr.rel (0) target = $region57
  $region56: #{actor_forward.1} parent=0 // pred_region
    _
  $region57: #{actor_forward.1} parent=0 // pred_fallthru
    _
  // Predicated region
  $region58: #{actor_forward.1} parent=0 // pred_check
    _
  $region59: #{actor_forward.1} parent=0 // pred_check_branch
    %2512 = sbr.rel (0) target = $region61
  $region60: #{actor_forward.1} parent=0 // pred_region
    _
  $region61: #{actor_forward.1} parent=0 // pred_fallthru
    _

</llo_original>
